<compile_context>
chip_gen: v7x
topology: tpu7x:2x2x1
jax: 0.10.0
libtpu: 0.0.40
codegen_flags: <defaults>
</compile_context>

<pallas_src>
import jax
import jax.numpy as jnp
import numpy as np
from jax import lax
from jax.experimental import pallas as pl
from jax.experimental.pallas import tpu as pltpu


def _round_up(x, m):
    return ((x + m - 1) // m) * m


# --------------------------- Pallas kernels ---------------------------------

def _conv_bn_relu_kernel(p_ref, w_ref, b_ref, o_ref):
    # p_ref: (block_m, Kp) bf16 im2col rows; w_ref: (Kp, Cp) bf16 (BN scale pre-folded);
    # b_ref: (1, Cp) f32 BN bias.  f32 accumulation, f32 epilogue, lane-dense store.
    acc = jnp.dot(p_ref[...], w_ref[...], preferred_element_type=jnp.float32)
    o_ref[...] = jnp.maximum(acc + b_ref[...], 0.0).astype(o_ref.dtype)


def _maxpool_kernel(ee_ref, eo_ref, oe_ref, oo_ref, o_ref):
    # Phase decomposition of the zero-padded conv output yp (zero pad == -inf pad here
    # because the values are post-ReLU, i.e. >= 0):
    #   ee = yp[0::2, 0::2]  (bt, Hp+1, Wp+1, C)
    #   eo = yp[0::2, 1::2]  (bt, Hp+1, Wp,   C)
    #   oe = yp[1::2, 0::2]  (bt, Hp,   Wp+1, C)
    #   oo = yp[1::2, 1::2]  (bt, Hp,   Wp,   C)
    # out[i, j] = max over the 3x3 window = max of 9 unit-offset phase slices.
    ee = ee_ref[...]
    eo = eo_ref[...]
    oe = oe_ref[...]
    oo = oo_ref[...]
    hp = oo.shape[1]
    wp = oo.shape[2]
    m_ee = jnp.maximum(jnp.maximum(ee[:, :hp, :wp], ee[:, :hp, 1:]),
                       jnp.maximum(ee[:, 1:, :wp], ee[:, 1:, 1:]))
    m_eo = jnp.maximum(eo[:, :hp], eo[:, 1:])
    m_oe = jnp.maximum(oe[:, :, :wp], oe[:, :, 1:])
    o_ref[...] = jnp.maximum(jnp.maximum(m_ee, m_eo), jnp.maximum(m_oe, oo))


# --------------------------- JAX glue + wrappers ------------------------------

def _im2col_3d(x, kernel, stride, padding, k_pad, out_dtype):
    """x: (N, Cin, T, H, W) -> (N*To*Ho*Wo, k_pad) in out_dtype, plus output dims."""
    kt, kh, kw = kernel
    st, sh, sw = stride
    pt, ph, pw = padding
    N, Cin, T, H, W = x.shape
    To = (T + 2 * pt - kt) // st + 1
    Ho = (H + 2 * ph - kh) // sh + 1
    Wo = (W + 2 * pw - kw) // sw + 1
    xp = jnp.pad(x, ((0, 0), (0, 0), (pt, pt), (ph, ph), (pw, pw)))
    cols = []
    for dt in range(kt):
        for dh in range(kh):
            for dw in range(kw):
                sl = lax.slice(
                    xp,
                    (0, 0, dt, dh, dw),
                    (N, Cin, dt + (To - 1) * st + 1,
                     dh + (Ho - 1) * sh + 1, dw + (Wo - 1) * sw + 1),
                    (1, 1, st, sh, sw))            # (N, Cin, To, Ho, Wo)
                cols.append(sl)
    patches = jnp.stack(cols, axis=2)              # (N, Cin, kt*kh*kw, To, Ho, Wo)
    patches = patches.transpose(0, 3, 4, 5, 1, 2)  # (N, To, Ho, Wo, Cin, kt*kh*kw)
    K = Cin * kt * kh * kw
    patches = patches.reshape(N * To * Ho * Wo, K)
    if k_pad > K:
        patches = jnp.pad(patches, ((0, 0), (0, k_pad - K)))
    return patches.astype(out_dtype), (To, Ho, Wo)


def conv3d_bn_relu(x, w, scale, bias, kernel, stride, padding, block_m=512):
    """Conv3d(no bias) + BN(eval, folded) + ReLU.  Returns (N, To, Ho, Wo, Cp) f32
    with Cout zero-padded to Cp=multiple of 128 (padded channels are exactly 0)."""
    N = x.shape[0]
    Cout, Cin = w.shape[0], w.shape[1]
    K = Cin * kernel[0] * kernel[1] * kernel[2]
    Kp = _round_up(K, 128)
    Cp = _round_up(Cout, 128)

    # bf16 GEMM operands (f32 accumulation in-kernel), K padded to 128-lane multiple.
    P, (To, Ho, Wo) = _im2col_3d(x, kernel, stride, padding, Kp, jnp.bfloat16)
    M = P.shape[0]
    block_m = min(block_m, _round_up(M, 8))

    # Fold BN scale into the weights: (P @ W) * s + b == P @ (W * s) + b.
    w2 = w.reshape(Cout, K).T.astype(jnp.float32) * scale.reshape(1, Cout).astype(jnp.float32)
    w2 = jnp.pad(w2, ((0, Kp - K), (0, Cp - Cout))).astype(jnp.bfloat16)   # (Kp, Cp)
    b2 = jnp.pad(bias.reshape(1, Cout).astype(jnp.float32), ((0, 0), (0, Cp - Cout)))

    out = pl.pallas_call(
        _conv_bn_relu_kernel,
        out_shape=jax.ShapeDtypeStruct((M, Cp), jnp.float32),
        grid=(pl.cdiv(M, block_m),),
        in_specs=[
            pl.BlockSpec((block_m, Kp), lambda i: (i, 0)),
            pl.BlockSpec((Kp, Cp), lambda i: (0, 0)),
            pl.BlockSpec((1, Cp), lambda i: (0, 0)),
        ],
        out_specs=pl.BlockSpec((block_m, Cp), lambda i: (i, 0)),
        compiler_params=pltpu.CompilerParams(
            dimension_semantics=("parallel",),
            vmem_limit_bytes=48 * 1024 * 1024),
    )(P, w2, b2)

    return out.reshape(N, To, Ho, Wo, Cp)


def maxpool_hw(y):
    """MaxPool over H,W with kernel 3, stride 2, padding 1.  y: (NT, Ho, Wo, C) >= 0."""
    NT, Ho, Wo, C = y.shape
    Hp = (Ho - 1) // 2 + 1
    Wp = (Wo - 1) // 2 + 1
    # Zero padding is equivalent to -inf padding here because y is post-ReLU (>= 0)
    # and every pooling window contains at least one real element.
    yp = jnp.pad(y, ((0, 0), (1, 1), (1, 1), (0, 0)))
    ee = yp[:, 0:2 * Hp + 1:2, 0:2 * Wp + 1:2, :]   # (NT, Hp+1, Wp+1, C)
    eo = yp[:, 0:2 * Hp + 1:2, 1:2 * Wp:2, :]       # (NT, Hp+1, Wp,   C)
    oe = yp[:, 1:2 * Hp:2, 0:2 * Wp + 1:2, :]       # (NT, Hp,   Wp+1, C)
    oo = yp[:, 1:2 * Hp:2, 1:2 * Wp:2, :]           # (NT, Hp,   Wp,   C)

    itemsize = jnp.dtype(y.dtype).itemsize
    frame_elems = ((Hp + 1) * (Wp + 1) + (Hp + 1) * Wp + Hp * (Wp + 1) + 2 * Hp * Wp) * C
    frame_bytes = max(1, frame_elems * itemsize)
    bt = max(1, min((2 << 20) // frame_bytes, -(-NT // 2)))
    bt = min(bt, NT)

    out = pl.pallas_call(
        _maxpool_kernel,
        out_shape=jax.ShapeDtypeStruct((NT, Hp, Wp, C), y.dtype),
        grid=(pl.cdiv(NT, bt),),
        in_specs=[
            pl.BlockSpec((bt, Hp + 1, Wp + 1, C), lambda i: (i, 0, 0, 0)),
            pl.BlockSpec((bt, Hp + 1, Wp, C), lambda i: (i, 0, 0, 0)),
            pl.BlockSpec((bt, Hp, Wp + 1, C), lambda i: (i, 0, 0, 0)),
            pl.BlockSpec((bt, Hp, Wp, C), lambda i: (i, 0, 0, 0)),
        ],
        out_specs=pl.BlockSpec((bt, Hp, Wp, C), lambda i: (i, 0, 0, 0)),
        compiler_params=pltpu.CompilerParams(
            dimension_semantics=("parallel",),
            vmem_limit_bytes=48 * 1024 * 1024),
    )(ee, eo, oe, oo)
    return out


def resnet_basic_stem_forward(x, params, kernel, stride, padding, eps=1e-5):
    """x: (N, Cin, T, H, W) NCDHW -> (N, Cout, To, Hp, Wp) NCDHW."""
    Cout = params["conv_w"].shape[0]
    scale = params["bn_gamma"] / jnp.sqrt(params["bn_var"] + eps)
    bias = params["bn_beta"] - params["bn_mean"] * scale
    y = conv3d_bn_relu(x, params["conv_w"], scale, bias, kernel, stride, padding)
    N, To, Ho, Wo, Cp = y.shape
    p = maxpool_hw(y.reshape(N * To, Ho, Wo, Cp))
    Hp, Wp = p.shape[1], p.shape[2]
    p = p.reshape(N, To, Hp, Wp, Cp)[..., :Cout]
    return p.transpose(0, 4, 1, 2, 3)


# --------------------------- pure-JAX reference -------------------------------

def _reference(x, params, kernel, stride, padding, eps=1e-5):
    y = lax.conv_general_dilated(
        x, params["conv_w"], window_strides=tuple(stride),
        padding=[(padding[0], padding[0]), (padding[1], padding[1]),
                 (padding[2], padding[2])],
        dimension_numbers=("NCDHW", "OIDHW", "NCDHW"))
    scale = params["bn_gamma"] / jnp.sqrt(params["bn_var"] + eps)
    bias = params["bn_beta"] - params["bn_mean"] * scale
    y = y * scale[None, :, None, None, None] + bias[None, :, None, None, None]
    y = jnp.maximum(y, 0.0)
    y = lax.reduce_window(
        y, -jnp.inf, lax.max,
        window_dimensions=(1, 1, 1, 3, 3), window_strides=(1, 1, 1, 2, 2),
        padding=((0, 0), (0, 0), (0, 0), (1, 1), (1, 1)))
    return y


# --------------------------------- main ---------------------------------------

if __name__ == "__main__":
    dim_in, dim_out = 3, 8
    kernel, stride, padding = (3, 7, 7), (1, 2, 2), (1, 3, 3)
    N, T, H, W = 2, 8, 16, 16

    key = jax.random.PRNGKey(0)
    k1, k2, k3, k4, k5, k6 = jax.random.split(key, 6)
    x = jax.random.normal(k1, (N, dim_in, T, H, W), jnp.float32)
    params = {
        "conv_w": jax.random.normal(k2, (dim_out, dim_in) + kernel, jnp.float32) * 0.05,
        "bn_gamma": jax.random.uniform(k3, (dim_out,), jnp.float32, 0.5, 1.5),
        "bn_beta": jax.random.normal(k4, (dim_out,), jnp.float32) * 0.1,
        "bn_mean": jax.random.normal(k5, (dim_out,), jnp.float32) * 0.1,
        "bn_var": jax.random.uniform(k6, (dim_out,), jnp.float32, 0.5, 1.5),
    }

    out = resnet_basic_stem_forward(x, params, kernel, stride, padding)
    out = jax.block_until_ready(out)

    ref = jax.block_until_ready(_reference(x, params, kernel, stride, padding))
    # bf16 GEMM operands (f32 accumulation) vs pure-f32 reference -> slightly looser tol.
    np.testing.assert_allclose(np.asarray(out), np.asarray(ref), rtol=2e-2, atol=2e-2)

    print("KERNEL_OK")
</pallas_src>

<mosaic_0001>
module attributes {stable_mosaic.version = 11 : i64} {
  func.func @_conv_bn_relu_kernel(%arg0: i32, %arg1: memref<512x512xbf16, #tpu.memory_space<vmem>>, %arg2: memref<512x128xbf16, #tpu.memory_space<vmem>>, %arg3: memref<1x128xf32, #tpu.memory_space<vmem>>, %arg4: memref<512x128xf32, #tpu.memory_space<vmem>>) attributes {dimension_semantics = [#tpu.dimension_semantics<parallel>], iteration_bounds = array<i64: 2>, scalar_prefetch = 0 : i64, scratch_operands = 0 : i64, tpu.core_type = #tpu.core_type<tc>, window_params = [{transform_indices = @transform_0, window_bounds = array<i64: 512, 512>}, {pipeline_mode = #tpu.pipeline_mode<synchronous>, transform_indices = @transform_1, window_bounds = array<i64: 512, 128>}, {pipeline_mode = #tpu.pipeline_mode<synchronous>, transform_indices = @transform_2, window_bounds = array<i64: 1, 128>}, {transform_indices = @transform_3, window_bounds = array<i64: 512, 128>}]} {
    %c0 = arith.constant 0 : index
    %c0_0 = arith.constant 0 : index
    %0 = vector.load %arg1[%c0, %c0_0] : memref<512x512xbf16, #tpu.memory_space<vmem>>, vector<512x512xbf16>
    %c0_1 = arith.constant 0 : index
    %c0_2 = arith.constant 0 : index
    %1 = vector.load %arg2[%c0_1, %c0_2] : memref<512x128xbf16, #tpu.memory_space<vmem>>, vector<512x128xbf16>
    %cst = arith.constant dense<0.000000e+00> : vector<512x128xf32>
    %2 = tpu.matmul %0, %1, %cst {dimension_numbers = #tpu.dot_dimension_numbers<[1], [0], [0], [1], [0, 0, 1, 1], [], []>} : vector<512x512xbf16>, vector<512x128xbf16>, vector<512x128xf32> -> vector<512x128xf32>
    %c0_3 = arith.constant 0 : index
    %c0_4 = arith.constant 0 : index
    %3 = vector.load %arg3[%c0_3, %c0_4] : memref<1x128xf32, #tpu.memory_space<vmem>>, vector<1x128xf32>
    %4 = vector.broadcast %3 : vector<1x128xf32> to vector<512x128xf32>
    %5 = arith.addf %2, %4 : vector<512x128xf32>
    %cst_5 = arith.constant 0.000000e+00 : f32
    %6 = vector.broadcast %cst_5 : f32 to vector<512x128xf32>
    %7 = arith.maximumf %5, %6 : vector<512x128xf32>
    %c0_6 = arith.constant 0 : index
    %c0_7 = arith.constant 0 : index
    %8 = vector.load %arg4[%c0_6, %c0_7] : memref<512x128xf32, #tpu.memory_space<vmem>>, vector<512x128xf32>
    tpu.vector_store %arg4[%c0_6, %c0_7], %7 {strides = array<i32>} : memref<512x128xf32, #tpu.memory_space<vmem>>, vector<512x128xf32>,
    return
  }
  func.func @transform_0(%arg0: i32) -> (i32, i32) {
    %c0_i32 = arith.constant 0 : i32
    %c0_i32_0 = arith.constant 0 : i32
    return %arg0, %c0_i32 : i32, i32
  }
  func.func @transform_1(%arg0: i32) -> (i32, i32) {
    %c0_i32 = arith.constant 0 : i32
    %c0_i32_0 = arith.constant 0 : i32
    %c0_i32_1 = arith.constant 0 : i32
    return %c0_i32, %c0_i32_0 : i32, i32
  }
  func.func @transform_2(%arg0: i32) -> (i32, i32) {
    %c0_i32 = arith.constant 0 : i32
    %c0_i32_0 = arith.constant 0 : i32
    %c0_i32_1 = arith.constant 0 : i32
    return %c0_i32, %c0_i32_0 : i32, i32
  }
  func.func @transform_3(%arg0: i32) -> (i32, i32) {
    %c0_i32 = arith.constant 0 : i32
    %c0_i32_0 = arith.constant 0 : i32
    return %arg0, %c0_i32 : i32, i32
  }
}

</mosaic_0001>

<llo_original>
// kernel: tpu_custom_call.1
$region0: #{tpu_custom_call.1}
  #allocation0 [shape = 'u32[]', space=smem, size = 0x4, offset = 0x4, fixed_abs, tag = 'smem constant byte address 0x4 - core index']
  #allocation1 [shape = 'u32[144,128]{1,0:T(1,128)}', space=vmem, size = 0x12000, scoped, tag = 'internal scratch']
  %s0 = inlined_call_operand.hbm [shape: bf16[1024,512], index: 0, kind: input, shape index: {}]
  %s1 = inlined_call_operand.hbm [shape: bf16[512,128], index: 1, kind: input, shape index: {}]
  %s2 = inlined_call_operand.vmem [shape: f32[1,128], index: 2, kind: input, shape index: {}]
  %s3 = inlined_call_operand.hbm [shape: f32[1024,128], index: 3, kind: output, shape index: {}]
  %s4 = sld [smem:[#allocation0]]
  $region53: #{tpu_custom_call.1} parent=0
    _
  %s6 = ssub.s32 1, %s4
  %s7 = scalar_select 0, %s6, %s4
  $region1: #{tpu_custom_call.1} parent=0
    #allocation2 [shape = 'u8[1048576]{0}', space=vmem, size = 0x100000, scoped, tag = 'input window, operand 0']
    #allocation3 [shape = 's32[2]{0}', space=sflag, size = 0x8, scoped, tag = 'scoped memory for tpu_custom_call.1']
    #allocation4 [shape = 's32[2]{0}', space=sflag, size = 0x8, scoped, tag = 'scoped memory for tpu_custom_call.1']
    #allocation5 [shape = 'u8[131072]{0}', space=vmem, size = 0x20000, scoped, tag = 'input window, operand 1, single buffered']
    #allocation6 [shape = 's32[1]{0}', space=sflag, size = 0x4, scoped, tag = 'scoped memory for tpu_custom_call.1']
    #allocation7 [shape = 'u8[524288]{0}', space=vmem, size = 0x80000, scoped, tag = 'output window, operand 0']
    %8 = vsyncpa [#allocation3], 0
    %s9 = scalar_lea.sflag [#allocation3], 1
    %10 = vsyncpa %s9, 0
    %11 = vsyncpa [#allocation6], 0
    %12 = vsyncpa [#allocation4], 0
    %s13 = scalar_lea.sflag [#allocation4], 1
    %14 = vsyncpa %s13, 0
    loop: start=0, step=1, limit=4
    $region2: #{tpu_custom_call.1} parent=1 // loop_pre_header
      _
    $region3: #{tpu_custom_call.1} parent=1 // loop_header
      %s16 = sphi 0, %s20
      %p17 = scmp.ge.s32.totalorder %s16, 4
      %s26 = sphi 0, %s28
      %s29 = sphi 0, %s26
      %s30 = sphi 0, %s29
      %s46 = sphi 0, %s30
      %s50 = sphi 0, %s50
      %s52 = sphi 0, %s50
      %s53 = sphi 0, %s52
      %s67 = sphi 0, %s53
      %s71 = sphi 0, %s71
      %s73 = sphi 0, %s71
      %s74 = sphi 0, %s73
      %s88 = sphi 0, %s74
      %s94 = sphi 0, %s96
      %s97 = sphi 0, %s94
      %s98 = sphi 0, %s97
      %s114 = sphi 0, %s98
    $region4: #{tpu_custom_call.1} parent=1 // loop_header_branch
      %19 = sbr.rel (%p17) target = $region8
    $region5: #{tpu_custom_call.1} parent=1 // loop_body
      %s21 = ssub.s32 %s16, 1
      %s22 = ssub.s32 %s16, 2
      %s23 = sadd.s32 %s16, 1
      %s24 = ssub.s32 %s16, %s23
      %p25 = scmp.eq.s32.totalorder %s24, 0
      %s27 = sadd.s32 %s26, 1
      %s28 = scalar_select %p25, %s26, %s27
      %p31 = pneg %p25
      %p32 = scmp.eq.s32.totalorder %s16, 1
      %p33 = por %p31, %p32
      %p34 = scmp.ne.s32.totalorder %s26, %s29
      %p35 = scmp.eq.s32.totalorder %s16, 0
      %p36 = por %p34, %p35
      %p37 = scmp.ne.s32.totalorder %s26, %s29
      %p38 = scmp.eq.s32.totalorder %s21, 1
      %p39 = por %p37, %p38
      %p40 = scmp.ne.s32.totalorder %s29, %s30
      %p41 = scmp.eq.s32.totalorder %s21, 0
      %p42 = por %p40, %p41
      %p43 = scmp.ne.s32.totalorder %s29, %s30
      %p44 = scmp.eq.s32.totalorder %s22, 1
      %p45 = por %p43, %p44
      %p47 = scmp.ne.s32.totalorder %s30, %s46
      %p48 = scmp.eq.s32.totalorder %s22, 0
      %p49 = por %p47, %p48
      %s51 = sadd.s32 %s50, 1
      %p54 = scmp.eq.s32.totalorder %s16, 1
      %p55 = scmp.ne.s32.totalorder %s50, %s52
      %p56 = scmp.eq.s32.totalorder %s16, 0
      %p57 = por %p55, %p56
      %p58 = scmp.ne.s32.totalorder %s50, %s52
      %p59 = scmp.eq.s32.totalorder %s21, 1
      %p60 = por %p58, %p59
      %p61 = scmp.ne.s32.totalorder %s52, %s53
      %p62 = scmp.eq.s32.totalorder %s21, 0
      %p63 = por %p61, %p62
      %p64 = scmp.ne.s32.totalorder %s52, %s53
      %p65 = scmp.eq.s32.totalorder %s22, 1
      %p66 = por %p64, %p65
      %p68 = scmp.ne.s32.totalorder %s53, %s67
      %p69 = scmp.eq.s32.totalorder %s22, 0
      %p70 = por %p68, %p69
      %s72 = sadd.s32 %s71, 1
      %p75 = scmp.eq.s32.totalorder %s16, 1
      %p76 = scmp.ne.s32.totalorder %s71, %s73
      %p77 = scmp.eq.s32.totalorder %s16, 0
      %p78 = por %p76, %p77
      %p79 = scmp.ne.s32.totalorder %s71, %s73
      %p80 = scmp.eq.s32.totalorder %s21, 1
      %p81 = por %p79, %p80
      %p82 = scmp.ne.s32.totalorder %s73, %s74
      %p83 = scmp.eq.s32.totalorder %s21, 0
      %p84 = por %p82, %p83
      %p85 = scmp.ne.s32.totalorder %s73, %s74
      %p86 = scmp.eq.s32.totalorder %s22, 1
      %p87 = por %p85, %p86
      %p89 = scmp.ne.s32.totalorder %s74, %s88
      %p90 = scmp.eq.s32.totalorder %s22, 0
      %p91 = por %p89, %p90
      %s92 = ssub.s32 %s16, %s23
      %p93 = scmp.eq.s32.totalorder %s92, 0
      %s95 = sadd.s32 %s94, 1
      %s96 = scalar_select %p93, %s94, %s95
      %p99 = pneg %p93
      %p100 = scmp.eq.s32.totalorder %s16, 1
      %p101 = por %p99, %p100
      %p102 = scmp.ne.s32.totalorder %s94, %s97
      %p103 = scmp.eq.s32.totalorder %s16, 0
      %p104 = por %p102, %p103
      %p105 = scmp.ne.s32.totalorder %s94, %s97
      %p106 = scmp.eq.s32.totalorder %s21, 1
      %p107 = por %p105, %p106
      %p108 = scmp.ne.s32.totalorder %s97, %s98
      %p109 = scmp.eq.s32.totalorder %s21, 0
      %p110 = por %p108, %p109
      %p111 = scmp.ne.s32.totalorder %s97, %s98
      %p112 = scmp.eq.s32.totalorder %s22, 1
      %p113 = por %p111, %p112
      %p115 = scmp.ne.s32.totalorder %s98, %s114
      %p116 = scmp.eq.s32.totalorder %s22, 0
      %p117 = por %p115, %p116
      %p118 = scmp.le.s32.totalorder 1, %s16
      %p119 = scmp.lt.s32.totalorder %s16, 3
      %p120 = pnand %p118, %p119
      %p121 = pneg %p120
      // Predicated region
      $region9: #{tpu_custom_call.1} parent=5 // pred_check
        _
      $region10: #{tpu_custom_call.1} parent=5 // pred_check_branch
        %123 = sbr.rel (%p120) target = $region12
      $region11: #{tpu_custom_call.1} parent=5 // pred_region
        %s124 = ssub.s32 %s16, 1
        // Predicated region
        $region13: #{tpu_custom_call.1} parent=11 // pred_check
          %p125 = pneg %p63
        $region14: #{tpu_custom_call.1} parent=11 // pred_check_branch
          %127 = sbr.rel (%p125) target = $region16
        $region15: #{tpu_custom_call.1} parent=11 // pred_region
          %s129 = ssub.s32 4096, 4096
          %130 = vsyncadd [#allocation6], %s129
          %s131 = sshll.u32 [#allocation5], 4
          %s132 = int_to_ptr.vmem [resolvable:$true] %s131
          %137 = dma.hbm_to_vmem [thread:$0]  %s1, 4096, %s132, [#allocation6], 64, 64, 4
        $region16: #{tpu_custom_call.1} parent=11 // pred_fallthru
          _
        // Predicated region
        $region17: #{tpu_custom_call.1} parent=11 // pred_check
          %p138 = pneg %p84
        $region18: #{tpu_custom_call.1} parent=11 // pred_check_branch
          %140 = sbr.rel (%p138) target = $region20
        $region19: #{tpu_custom_call.1} parent=11 // pred_region
          _
        $region20: #{tpu_custom_call.1} parent=11 // pred_fallthru
          _
      $region12: #{tpu_custom_call.1} parent=5 // pred_fallthru
        _
      %p141 = scmp.lt.s32.totalorder %s16, 2
      // Predicated region
      $region21: #{tpu_custom_call.1} parent=5 // pred_check
        %p142 = pneg %p141
      $region22: #{tpu_custom_call.1} parent=5 // pred_check_branch
        %144 = sbr.rel (%p142) target = $region24
      $region23: #{tpu_custom_call.1} parent=5 // pred_region
        // Predicated region
        $region25: #{tpu_custom_call.1} parent=23 // pred_check
          %p145 = pneg %p36
        $region26: #{tpu_custom_call.1} parent=23 // pred_check_branch
          %147 = sbr.rel (%p145) target = $region28
        $region27: #{tpu_custom_call.1} parent=23 // pred_region
          %s148 = sand.u32 %s26, 1
          %s149 = scalar_lea.sflag [#allocation3], %s148
          %s150 = sand.u32 %s26, 1
          %s151 = smul.addr %s150, 1024
          %s152 = scalar_lea.vmem [#allocation2], %s151
          %s153 = smul.u32 64, %s16
          %s155 = ssub.s32 16384, 16384
          %156 = vsyncadd %s149, %s155
          %s157 = smul.addr %s153, 4
          %s158 = smul.addr %s157, 64
          %s159 = scalar_lea.hbm %s0, %s158
          %s160 = sshll.u32 %s152, 4
          %s161 = int_to_ptr.vmem [resolvable:$true] %s160
          %166 = dma.hbm_to_vmem [thread:$0]  %s159, 16384, %s161, %s149, 256, 256, 16
        $region28: #{tpu_custom_call.1} parent=23 // pred_fallthru
          _
      $region24: #{tpu_custom_call.1} parent=5 // pred_fallthru
        _
      %p167 = scmp.le.s32.totalorder 1, %s16
      %p168 = scmp.lt.s32.totalorder %s16, 3
      %p169 = pnand %p167, %p168
      %p170 = pneg %p169
      // Predicated region
      $region29: #{tpu_custom_call.1} parent=5 // pred_check
        _
      $region30: #{tpu_custom_call.1} parent=5 // pred_check_branch
        %172 = sbr.rel (%p169) target = $region32
      $region31: #{tpu_custom_call.1} parent=5 // pred_region
        %s173 = ssub.s32 %s16, 1
        %s174 = sand.u32 %s29, 1
        %s175 = scalar_lea.sflag [#allocation3], %s174
        %s176 = sand.u32 %s29, 1
        %s177 = smul.addr %s176, 1024
        %s178 = scalar_lea.vmem [#allocation2], %s177
        // Predicated region
        $region33: #{tpu_custom_call.1} parent=31 // pred_check
          %p179 = pneg %p42
        $region34: #{tpu_custom_call.1} parent=31 // pred_check_branch
          %181 = sbr.rel (%p179) target = $region36
        $region35: #{tpu_custom_call.1} parent=31 // pred_region
          %182 = dma.done %s175, 16384
        $region36: #{tpu_custom_call.1} parent=31 // pred_fallthru
          _
        // Predicated region
        $region37: #{tpu_custom_call.1} parent=31 // pred_check
          %p183 = pneg %p63
        $region38: #{tpu_custom_call.1} parent=31 // pred_check_branch
          %185 = sbr.rel (%p183) target = $region40
        $region39: #{tpu_custom_call.1} parent=31 // pred_region
          %186 = dma.done [#allocation6], 4096
        $region40: #{tpu_custom_call.1} parent=31 // pred_fallthru
          _
        %s187 = sand.u32 %s29, 1
        %s188 = scalar_lea.sflag [#allocation3], %s187
        %s189 = sand.u32 %s29, 1
        %s190 = smul.addr %s189, 1024
        %s191 = scalar_lea.vmem [#allocation2], %s190
        %p192 = pneg %p42
        %p193 = pneg %p39
        %p194 = pneg %p63
        %p195 = pneg %p60
        %p196 = pneg %p84
        %p197 = pneg %p81
        %p198 = pneg %p110
        %p199 = pneg %p107
        %s200 = sand.u32 %s97, 1
        %s201 = scalar_lea.sflag [#allocation4], %s200
        %s202 = sand.u32 %s97, 1
        %s203 = smul.addr %s202, 512
        %s204 = scalar_lea.vmem [#allocation7], %s203
        %s205 = smul.u32 64, %s21
        %s206 = smul.u32 64, %s21
        %v208 = vld [vmem:[%s178] sm:$0xff]
        %v209 = vld [vmem:[%s178 + $0x8] sm:$0xff]
        %v210 = vld [vmem:[%s178 + $0x10] sm:$0xff]
        %v211 = vld [vmem:[%s178 + $0x18] sm:$0xff]
        %v212 = vld [vmem:[%s178 + $0x20] sm:$0xff]
        %v213 = vld [vmem:[%s178 + $0x28] sm:$0xff]
        %v214 = vld [vmem:[%s178 + $0x30] sm:$0xff]
        %v215 = vld [vmem:[%s178 + $0x38] sm:$0xff]
        %v216 = vld [vmem:[%s178 + $0x40] sm:$0xff]
        %v217 = vld [vmem:[%s178 + $0x48] sm:$0xff]
        %v218 = vld [vmem:[%s178 + $0x50] sm:$0xff]
        %v219 = vld [vmem:[%s178 + $0x58] sm:$0xff]
        %v220 = vld [vmem:[%s178 + $0x60] sm:$0xff]
        %v221 = vld [vmem:[%s178 + $0x68] sm:$0xff]
        %v222 = vld [vmem:[%s178 + $0x70] sm:$0xff]
        %v223 = vld [vmem:[%s178 + $0x78] sm:$0xff]
        %v224 = vld [vmem:[%s178 + $0x80] sm:$0xff]
        %v225 = vld [vmem:[%s178 + $0x88] sm:$0xff]
        %v226 = vld [vmem:[%s178 + $0x90] sm:$0xff]
        %v227 = vld [vmem:[%s178 + $0x98] sm:$0xff]
        %v228 = vld [vmem:[%s178 + $0xa0] sm:$0xff]
        %v229 = vld [vmem:[%s178 + $0xa8] sm:$0xff]
        %v230 = vld [vmem:[%s178 + $0xb0] sm:$0xff]
        %v231 = vld [vmem:[%s178 + $0xb8] sm:$0xff]
        %v232 = vld [vmem:[%s178 + $0xc0] sm:$0xff]
        %v233 = vld [vmem:[%s178 + $0xc8] sm:$0xff]
        %v234 = vld [vmem:[%s178 + $0xd0] sm:$0xff]
        %v235 = vld [vmem:[%s178 + $0xd8] sm:$0xff]
        %v236 = vld [vmem:[%s178 + $0xe0] sm:$0xff]
        %v237 = vld [vmem:[%s178 + $0xe8] sm:$0xff]
        %v238 = vld [vmem:[%s178 + $0xf0] sm:$0xff]
        %v239 = vld [vmem:[%s178 + $0xf8] sm:$0xff]
        %v240 = vld [vmem:[%s178 + $0x100] sm:$0xff]
        %v241 = vld [vmem:[%s178 + $0x108] sm:$0xff]
        %v242 = vld [vmem:[%s178 + $0x110] sm:$0xff]
        %v243 = vld [vmem:[%s178 + $0x118] sm:$0xff]
        %v244 = vld [vmem:[%s178 + $0x120] sm:$0xff]
        %v245 = vld [vmem:[%s178 + $0x128] sm:$0xff]
        %v246 = vld [vmem:[%s178 + $0x130] sm:$0xff]
        %v247 = vld [vmem:[%s178 + $0x138] sm:$0xff]
        %v248 = vld [vmem:[%s178 + $0x140] sm:$0xff]
        %v249 = vld [vmem:[%s178 + $0x148] sm:$0xff]
        %v250 = vld [vmem:[%s178 + $0x150] sm:$0xff]
        %v251 = vld [vmem:[%s178 + $0x158] sm:$0xff]
        %v252 = vld [vmem:[%s178 + $0x160] sm:$0xff]
        %v253 = vld [vmem:[%s178 + $0x168] sm:$0xff]
        %v254 = vld [vmem:[%s178 + $0x170] sm:$0xff]
        %v255 = vld [vmem:[%s178 + $0x178] sm:$0xff]
        %v256 = vld [vmem:[%s178 + $0x180] sm:$0xff]
        %v257 = vld [vmem:[%s178 + $0x188] sm:$0xff]
        %v258 = vld [vmem:[%s178 + $0x190] sm:$0xff]
        %v259 = vld [vmem:[%s178 + $0x198] sm:$0xff]
        %v260 = vld [vmem:[%s178 + $0x1a0] sm:$0xff]
        %v261 = vld [vmem:[%s178 + $0x1a8] sm:$0xff]
        %v262 = vld [vmem:[%s178 + $0x1b0] sm:$0xff]
        %v263 = vld [vmem:[%s178 + $0x1b8] sm:$0xff]
        %v264 = vld [vmem:[%s178 + $0x1c0] sm:$0xff]
        %v265 = vld [vmem:[%s178 + $0x1c8] sm:$0xff]
        %v266 = vld [vmem:[%s178 + $0x1d0] sm:$0xff]
        %v267 = vld [vmem:[%s178 + $0x1d8] sm:$0xff]
        %v268 = vld [vmem:[%s178 + $0x1e0] sm:$0xff]
        %v269 = vld [vmem:[%s178 + $0x1e8] sm:$0xff]
        %v270 = vld [vmem:[%s178 + $0x1f0] sm:$0xff]
        %v271 = vld [vmem:[%s178 + $0x1f8] sm:$0xff]
        %v272 = vld [vmem:[%s178 + $0x200] sm:$0xff]
        %v273 = vld [vmem:[%s178 + $0x208] sm:$0xff]
        %v274 = vld [vmem:[%s178 + $0x210] sm:$0xff]
        %v275 = vld [vmem:[%s178 + $0x218] sm:$0xff]
        %v276 = vld [vmem:[%s178 + $0x220] sm:$0xff]
        %v277 = vld [vmem:[%s178 + $0x228] sm:$0xff]
        %v278 = vld [vmem:[%s178 + $0x230] sm:$0xff]
        %v279 = vld [vmem:[%s178 + $0x238] sm:$0xff]
        %v280 = vld [vmem:[%s178 + $0x240] sm:$0xff]
        %v281 = vld [vmem:[%s178 + $0x248] sm:$0xff]
        %v282 = vld [vmem:[%s178 + $0x250] sm:$0xff]
        %v283 = vld [vmem:[%s178 + $0x258] sm:$0xff]
        %v284 = vld [vmem:[%s178 + $0x260] sm:$0xff]
        %v285 = vld [vmem:[%s178 + $0x268] sm:$0xff]
        %v286 = vld [vmem:[%s178 + $0x270] sm:$0xff]
        %v287 = vld [vmem:[%s178 + $0x278] sm:$0xff]
        %v288 = vld [vmem:[%s178 + $0x280] sm:$0xff]
        %v289 = vld [vmem:[%s178 + $0x288] sm:$0xff]
        %v290 = vld [vmem:[%s178 + $0x290] sm:$0xff]
        %v291 = vld [vmem:[%s178 + $0x298] sm:$0xff]
        %v292 = vld [vmem:[%s178 + $0x2a0] sm:$0xff]
        %v293 = vld [vmem:[%s178 + $0x2a8] sm:$0xff]
        %v294 = vld [vmem:[%s178 + $0x2b0] sm:$0xff]
        %v295 = vld [vmem:[%s178 + $0x2b8] sm:$0xff]
        %v296 = vld [vmem:[%s178 + $0x2c0] sm:$0xff]
        %v297 = vld [vmem:[%s178 + $0x2c8] sm:$0xff]
        %v298 = vld [vmem:[%s178 + $0x2d0] sm:$0xff]
        %v299 = vld [vmem:[%s178 + $0x2d8] sm:$0xff]
        %v300 = vld [vmem:[%s178 + $0x2e0] sm:$0xff]
        %v301 = vld [vmem:[%s178 + $0x2e8] sm:$0xff]
        %v302 = vld [vmem:[%s178 + $0x2f0] sm:$0xff]
        %v303 = vld [vmem:[%s178 + $0x2f8] sm:$0xff]
        %v304 = vld [vmem:[%s178 + $0x300] sm:$0xff]
        %v305 = vld [vmem:[%s178 + $0x308] sm:$0xff]
        %v306 = vld [vmem:[%s178 + $0x310] sm:$0xff]
        %v307 = vld [vmem:[%s178 + $0x318] sm:$0xff]
        %v308 = vld [vmem:[%s178 + $0x320] sm:$0xff]
        %v309 = vld [vmem:[%s178 + $0x328] sm:$0xff]
        %v310 = vld [vmem:[%s178 + $0x330] sm:$0xff]
        %v311 = vld [vmem:[%s178 + $0x338] sm:$0xff]
        %v312 = vld [vmem:[%s178 + $0x340] sm:$0xff]
        %v313 = vld [vmem:[%s178 + $0x348] sm:$0xff]
        %v314 = vld [vmem:[%s178 + $0x350] sm:$0xff]
        %v315 = vld [vmem:[%s178 + $0x358] sm:$0xff]
        %v316 = vld [vmem:[%s178 + $0x360] sm:$0xff]
        %v317 = vld [vmem:[%s178 + $0x368] sm:$0xff]
        %v318 = vld [vmem:[%s178 + $0x370] sm:$0xff]
        %v319 = vld [vmem:[%s178 + $0x378] sm:$0xff]
        %v320 = vld [vmem:[%s178 + $0x380] sm:$0xff]
        %v321 = vld [vmem:[%s178 + $0x388] sm:$0xff]
        %v322 = vld [vmem:[%s178 + $0x390] sm:$0xff]
        %v323 = vld [vmem:[%s178 + $0x398] sm:$0xff]
        %v324 = vld [vmem:[%s178 + $0x3a0] sm:$0xff]
        %v325 = vld [vmem:[%s178 + $0x3a8] sm:$0xff]
        %v326 = vld [vmem:[%s178 + $0x3b0] sm:$0xff]
        %v327 = vld [vmem:[%s178 + $0x3b8] sm:$0xff]
        %v328 = vld [vmem:[%s178 + $0x3c0] sm:$0xff]
        %v329 = vld [vmem:[%s178 + $0x3c8] sm:$0xff]
        %v330 = vld [vmem:[%s178 + $0x3d0] sm:$0xff]
        %v331 = vld [vmem:[%s178 + $0x3d8] sm:$0xff]
        %v332 = vld [vmem:[%s178 + $0x3e0] sm:$0xff]
        %v333 = vld [vmem:[%s178 + $0x3e8] sm:$0xff]
        %v334 = vld [vmem:[%s178 + $0x3f0] sm:$0xff]
        %v335 = vld [vmem:[%s178 + $0x3f8] sm:$0xff]
        %v336 = vld [vmem:[#allocation5] sm:$0xf]
        %v337 = vld [vmem:[#allocation5 + $0x4] sm:$0xf]
        %v338 = vld [vmem:[#allocation5 + $0x8] sm:$0xf]
        %v339 = vld [vmem:[#allocation5 + $0xc] sm:$0xf]
        %v340 = vld [vmem:[#allocation5 + $0x10] sm:$0xf]
        %v341 = vld [vmem:[#allocation5 + $0x14] sm:$0xf]
        %v342 = vld [vmem:[#allocation5 + $0x18] sm:$0xf]
        %v343 = vld [vmem:[#allocation5 + $0x1c] sm:$0xf]
        %v344 = vld [vmem:[#allocation5 + $0x20] sm:$0xf]
        %v345 = vld [vmem:[#allocation5 + $0x24] sm:$0xf]
        %v346 = vld [vmem:[#allocation5 + $0x28] sm:$0xf]
        %v347 = vld [vmem:[#allocation5 + $0x2c] sm:$0xf]
        %v348 = vld [vmem:[#allocation5 + $0x30] sm:$0xf]
        %v349 = vld [vmem:[#allocation5 + $0x34] sm:$0xf]
        %v350 = vld [vmem:[#allocation5 + $0x38] sm:$0xf]
        %v351 = vld [vmem:[#allocation5 + $0x3c] sm:$0xf]
        %v352 = vld [vmem:[#allocation5 + $0x40] sm:$0xf]
        %v353 = vld [vmem:[#allocation5 + $0x44] sm:$0xf]
        %v354 = vld [vmem:[#allocation5 + $0x48] sm:$0xf]
        %v355 = vld [vmem:[#allocation5 + $0x4c] sm:$0xf]
        %v356 = vld [vmem:[#allocation5 + $0x50] sm:$0xf]
        %v357 = vld [vmem:[#allocation5 + $0x54] sm:$0xf]
        %v358 = vld [vmem:[#allocation5 + $0x58] sm:$0xf]
        %v359 = vld [vmem:[#allocation5 + $0x5c] sm:$0xf]
        %v360 = vld [vmem:[#allocation5 + $0x60] sm:$0xf]
        %v361 = vld [vmem:[#allocation5 + $0x64] sm:$0xf]
        %v362 = vld [vmem:[#allocation5 + $0x68] sm:$0xf]
        %v363 = vld [vmem:[#allocation5 + $0x6c] sm:$0xf]
        %v364 = vld [vmem:[#allocation5 + $0x70] sm:$0xf]
        %v365 = vld [vmem:[#allocation5 + $0x74] sm:$0xf]
        %v366 = vld [vmem:[#allocation5 + $0x78] sm:$0xf]
        %v367 = vld [vmem:[#allocation5 + $0x7c] sm:$0xf]
        %v368 = vld [vmem:[#allocation5 + $0x80] sm:$0xf]
        %v369 = vld [vmem:[#allocation5 + $0x84] sm:$0xf]
        %v370 = vld [vmem:[#allocation5 + $0x88] sm:$0xf]
        %v371 = vld [vmem:[#allocation5 + $0x8c] sm:$0xf]
        %v372 = vld [vmem:[#allocation5 + $0x90] sm:$0xf]
        %v373 = vld [vmem:[#allocation5 + $0x94] sm:$0xf]
        %v374 = vld [vmem:[#allocation5 + $0x98] sm:$0xf]
        %v375 = vld [vmem:[#allocation5 + $0x9c] sm:$0xf]
        %v376 = vld [vmem:[#allocation5 + $0xa0] sm:$0xf]
        %v377 = vld [vmem:[#allocation5 + $0xa4] sm:$0xf]
        %v378 = vld [vmem:[#allocation5 + $0xa8] sm:$0xf]
        %v379 = vld [vmem:[#allocation5 + $0xac] sm:$0xf]
        %v380 = vld [vmem:[#allocation5 + $0xb0] sm:$0xf]
        %v381 = vld [vmem:[#allocation5 + $0xb4] sm:$0xf]
        %v382 = vld [vmem:[#allocation5 + $0xb8] sm:$0xf]
        %v383 = vld [vmem:[#allocation5 + $0xbc] sm:$0xf]
        %v384 = vld [vmem:[#allocation5 + $0xc0] sm:$0xf]
        %v385 = vld [vmem:[#allocation5 + $0xc4] sm:$0xf]
        %v386 = vld [vmem:[#allocation5 + $0xc8] sm:$0xf]
        %v387 = vld [vmem:[#allocation5 + $0xcc] sm:$0xf]
        %v388 = vld [vmem:[#allocation5 + $0xd0] sm:$0xf]
        %v389 = vld [vmem:[#allocation5 + $0xd4] sm:$0xf]
        %v390 = vld [vmem:[#allocation5 + $0xd8] sm:$0xf]
        %v391 = vld [vmem:[#allocation5 + $0xdc] sm:$0xf]
        %v392 = vld [vmem:[#allocation5 + $0xe0] sm:$0xf]
        %v393 = vld [vmem:[#allocation5 + $0xe4] sm:$0xf]
        %v394 = vld [vmem:[#allocation5 + $0xe8] sm:$0xf]
        %v395 = vld [vmem:[#allocation5 + $0xec] sm:$0xf]
        %v396 = vld [vmem:[#allocation5 + $0xf0] sm:$0xf]
        %v397 = vld [vmem:[#allocation5 + $0xf4] sm:$0xf]
        %v398 = vld [vmem:[#allocation5 + $0xf8] sm:$0xf]
        %v399 = vld [vmem:[#allocation5 + $0xfc] sm:$0xf]
        %v400 = vld [vmem:[%s2] sm:$0x1]
        %v402 = vlaneseq
        %v403 = vshrl.u32 %v402, 7
        %v404 = vsub.s32 0, %v403
        %v405 = vrot.slane %v400, %v404
        %v535 = vunpack.c.l.b16 %v208
        %v536 = vunpack.c.h.b16 %v208
        %v537 = vunpack.c.l.b16 %v209
        %v538 = vunpack.c.h.b16 %v209
        %v539 = vunpack.c.l.b16 %v210
        %v540 = vunpack.c.h.b16 %v210
        %v541 = vunpack.c.l.b16 %v211
        %v542 = vunpack.c.h.b16 %v211
        %v543 = vunpack.c.l.b16 %v212
        %v544 = vunpack.c.h.b16 %v212
        %v545 = vunpack.c.l.b16 %v213
        %v546 = vunpack.c.h.b16 %v213
        %v547 = vunpack.c.l.b16 %v214
        %v548 = vunpack.c.h.b16 %v214
        %v549 = vunpack.c.l.b16 %v215
        %v550 = vunpack.c.h.b16 %v215
        %v551 = vunpack.c.l.b16 %v216
        %v552 = vunpack.c.h.b16 %v216
        %v553 = vunpack.c.l.b16 %v217
        %v554 = vunpack.c.h.b16 %v217
        %v555 = vunpack.c.l.b16 %v218
        %v556 = vunpack.c.h.b16 %v218
        %v557 = vunpack.c.l.b16 %v219
        %v558 = vunpack.c.h.b16 %v219
        %v559 = vunpack.c.l.b16 %v220
        %v560 = vunpack.c.h.b16 %v220
        %v561 = vunpack.c.l.b16 %v221
        %v562 = vunpack.c.h.b16 %v221
        %v563 = vunpack.c.l.b16 %v222
        %v564 = vunpack.c.h.b16 %v222
        %v565 = vunpack.c.l.b16 %v223
        %v566 = vunpack.c.h.b16 %v223
        %v567 = vunpack.c.l.b16 %v224
        %v568 = vunpack.c.h.b16 %v224
        %v569 = vunpack.c.l.b16 %v225
        %v570 = vunpack.c.h.b16 %v225
        %v571 = vunpack.c.l.b16 %v226
        %v572 = vunpack.c.h.b16 %v226
        %v573 = vunpack.c.l.b16 %v227
        %v574 = vunpack.c.h.b16 %v227
        %v575 = vunpack.c.l.b16 %v228
        %v576 = vunpack.c.h.b16 %v228
        %v577 = vunpack.c.l.b16 %v229
        %v578 = vunpack.c.h.b16 %v229
        %v579 = vunpack.c.l.b16 %v230
        %v580 = vunpack.c.h.b16 %v230
        %v581 = vunpack.c.l.b16 %v231
        %v582 = vunpack.c.h.b16 %v231
        %v583 = vunpack.c.l.b16 %v232
        %v584 = vunpack.c.h.b16 %v232
        %v585 = vunpack.c.l.b16 %v233
        %v586 = vunpack.c.h.b16 %v233
        %v587 = vunpack.c.l.b16 %v234
        %v588 = vunpack.c.h.b16 %v234
        %v589 = vunpack.c.l.b16 %v235
        %v590 = vunpack.c.h.b16 %v235
        %v591 = vunpack.c.l.b16 %v236
        %v592 = vunpack.c.h.b16 %v236
        %v593 = vunpack.c.l.b16 %v237
        %v594 = vunpack.c.h.b16 %v237
        %v595 = vunpack.c.l.b16 %v238
        %v596 = vunpack.c.h.b16 %v238
        %v597 = vunpack.c.l.b16 %v239
        %v598 = vunpack.c.h.b16 %v239
        %v599 = vunpack.c.l.b16 %v240
        %v600 = vunpack.c.h.b16 %v240
        %v601 = vunpack.c.l.b16 %v241
        %v602 = vunpack.c.h.b16 %v241
        %v603 = vunpack.c.l.b16 %v242
        %v604 = vunpack.c.h.b16 %v242
        %v605 = vunpack.c.l.b16 %v243
        %v606 = vunpack.c.h.b16 %v243
        %v607 = vunpack.c.l.b16 %v244
        %v608 = vunpack.c.h.b16 %v244
        %v609 = vunpack.c.l.b16 %v245
        %v610 = vunpack.c.h.b16 %v245
        %v611 = vunpack.c.l.b16 %v246
        %v612 = vunpack.c.h.b16 %v246
        %v613 = vunpack.c.l.b16 %v247
        %v614 = vunpack.c.h.b16 %v247
        %v615 = vunpack.c.l.b16 %v248
        %v616 = vunpack.c.h.b16 %v248
        %v617 = vunpack.c.l.b16 %v249
        %v618 = vunpack.c.h.b16 %v249
        %v619 = vunpack.c.l.b16 %v250
        %v620 = vunpack.c.h.b16 %v250
        %v621 = vunpack.c.l.b16 %v251
        %v622 = vunpack.c.h.b16 %v251
        %v623 = vunpack.c.l.b16 %v252
        %v624 = vunpack.c.h.b16 %v252
        %v625 = vunpack.c.l.b16 %v253
        %v626 = vunpack.c.h.b16 %v253
        %v627 = vunpack.c.l.b16 %v254
        %v628 = vunpack.c.h.b16 %v254
        %v629 = vunpack.c.l.b16 %v255
        %v630 = vunpack.c.h.b16 %v255
        %v631 = vunpack.c.l.b16 %v256
        %v632 = vunpack.c.h.b16 %v256
        %v633 = vunpack.c.l.b16 %v257
        %v634 = vunpack.c.h.b16 %v257
        %v635 = vunpack.c.l.b16 %v258
        %v636 = vunpack.c.h.b16 %v258
        %v637 = vunpack.c.l.b16 %v259
        %v638 = vunpack.c.h.b16 %v259
        %v639 = vunpack.c.l.b16 %v260
        %v640 = vunpack.c.h.b16 %v260
        %v641 = vunpack.c.l.b16 %v261
        %v642 = vunpack.c.h.b16 %v261
        %v643 = vunpack.c.l.b16 %v262
        %v644 = vunpack.c.h.b16 %v262
        %v645 = vunpack.c.l.b16 %v263
        %v646 = vunpack.c.h.b16 %v263
        %v647 = vunpack.c.l.b16 %v264
        %v648 = vunpack.c.h.b16 %v264
        %v649 = vunpack.c.l.b16 %v265
        %v650 = vunpack.c.h.b16 %v265
        %v651 = vunpack.c.l.b16 %v266
        %v652 = vunpack.c.h.b16 %v266
        %v653 = vunpack.c.l.b16 %v267
        %v654 = vunpack.c.h.b16 %v267
        %v655 = vunpack.c.l.b16 %v268
        %v656 = vunpack.c.h.b16 %v268
        %v657 = vunpack.c.l.b16 %v269
        %v658 = vunpack.c.h.b16 %v269
        %v659 = vunpack.c.l.b16 %v270
        %v660 = vunpack.c.h.b16 %v270
        %v661 = vunpack.c.l.b16 %v271
        %v662 = vunpack.c.h.b16 %v271
        %v663 = vunpack.c.l.b16 %v272
        %v664 = vunpack.c.h.b16 %v272
        %v665 = vunpack.c.l.b16 %v273
        %v666 = vunpack.c.h.b16 %v273
        %v667 = vunpack.c.l.b16 %v274
        %v668 = vunpack.c.h.b16 %v274
        %v669 = vunpack.c.l.b16 %v275
        %v670 = vunpack.c.h.b16 %v275
        %v671 = vunpack.c.l.b16 %v276
        %v672 = vunpack.c.h.b16 %v276
        %v673 = vunpack.c.l.b16 %v277
        %v674 = vunpack.c.h.b16 %v277
        %v675 = vunpack.c.l.b16 %v278
        %v676 = vunpack.c.h.b16 %v278
        %v677 = vunpack.c.l.b16 %v279
        %v678 = vunpack.c.h.b16 %v279
        %v679 = vunpack.c.l.b16 %v280
        %v680 = vunpack.c.h.b16 %v280
        %v681 = vunpack.c.l.b16 %v281
        %v682 = vunpack.c.h.b16 %v281
        %v683 = vunpack.c.l.b16 %v282
        %v684 = vunpack.c.h.b16 %v282
        %v685 = vunpack.c.l.b16 %v283
        %v686 = vunpack.c.h.b16 %v283
        %v687 = vunpack.c.l.b16 %v284
        %v688 = vunpack.c.h.b16 %v284
        %v689 = vunpack.c.l.b16 %v285
        %v690 = vunpack.c.h.b16 %v285
        %v691 = vunpack.c.l.b16 %v286
        %v692 = vunpack.c.h.b16 %v286
        %v693 = vunpack.c.l.b16 %v287
        %v694 = vunpack.c.h.b16 %v287
        %v695 = vunpack.c.l.b16 %v288
        %v696 = vunpack.c.h.b16 %v288
        %v697 = vunpack.c.l.b16 %v289
        %v698 = vunpack.c.h.b16 %v289
        %v699 = vunpack.c.l.b16 %v290
        %v700 = vunpack.c.h.b16 %v290
        %v701 = vunpack.c.l.b16 %v291
        %v702 = vunpack.c.h.b16 %v291
        %v703 = vunpack.c.l.b16 %v292
        %v704 = vunpack.c.h.b16 %v292
        %v705 = vunpack.c.l.b16 %v293
        %v706 = vunpack.c.h.b16 %v293
        %v707 = vunpack.c.l.b16 %v294
        %v708 = vunpack.c.h.b16 %v294
        %v709 = vunpack.c.l.b16 %v295
        %v710 = vunpack.c.h.b16 %v295
        %v711 = vunpack.c.l.b16 %v296
        %v712 = vunpack.c.h.b16 %v296
        %v713 = vunpack.c.l.b16 %v297
        %v714 = vunpack.c.h.b16 %v297
        %v715 = vunpack.c.l.b16 %v298
        %v716 = vunpack.c.h.b16 %v298
        %v717 = vunpack.c.l.b16 %v299
        %v718 = vunpack.c.h.b16 %v299
        %v719 = vunpack.c.l.b16 %v300
        %v720 = vunpack.c.h.b16 %v300
        %v721 = vunpack.c.l.b16 %v301
        %v722 = vunpack.c.h.b16 %v301
        %v723 = vunpack.c.l.b16 %v302
        %v724 = vunpack.c.h.b16 %v302
        %v725 = vunpack.c.l.b16 %v303
        %v726 = vunpack.c.h.b16 %v303
        %v727 = vunpack.c.l.b16 %v304
        %v728 = vunpack.c.h.b16 %v304
        %v729 = vunpack.c.l.b16 %v305
        %v730 = vunpack.c.h.b16 %v305
        %v731 = vunpack.c.l.b16 %v306
        %v732 = vunpack.c.h.b16 %v306
        %v733 = vunpack.c.l.b16 %v307
        %v734 = vunpack.c.h.b16 %v307
        %v735 = vunpack.c.l.b16 %v308
        %v736 = vunpack.c.h.b16 %v308
        %v737 = vunpack.c.l.b16 %v309
        %v738 = vunpack.c.h.b16 %v309
        %v739 = vunpack.c.l.b16 %v310
        %v740 = vunpack.c.h.b16 %v310
        %v741 = vunpack.c.l.b16 %v311
        %v742 = vunpack.c.h.b16 %v311
        %v743 = vunpack.c.l.b16 %v312
        %v744 = vunpack.c.h.b16 %v312
        %v745 = vunpack.c.l.b16 %v313
        %v746 = vunpack.c.h.b16 %v313
        %v747 = vunpack.c.l.b16 %v314
        %v748 = vunpack.c.h.b16 %v314
        %v749 = vunpack.c.l.b16 %v315
        %v750 = vunpack.c.h.b16 %v315
        %v751 = vunpack.c.l.b16 %v316
        %v752 = vunpack.c.h.b16 %v316
        %v753 = vunpack.c.l.b16 %v317
        %v754 = vunpack.c.h.b16 %v317
        %v755 = vunpack.c.l.b16 %v318
        %v756 = vunpack.c.h.b16 %v318
        %v757 = vunpack.c.l.b16 %v319
        %v758 = vunpack.c.h.b16 %v319
        %v759 = vunpack.c.l.b16 %v320
        %v760 = vunpack.c.h.b16 %v320
        %v761 = vunpack.c.l.b16 %v321
        %v762 = vunpack.c.h.b16 %v321
        %v763 = vunpack.c.l.b16 %v322
        %v764 = vunpack.c.h.b16 %v322
        %v765 = vunpack.c.l.b16 %v323
        %v766 = vunpack.c.h.b16 %v323
        %v767 = vunpack.c.l.b16 %v324
        %v768 = vunpack.c.h.b16 %v324
        %v769 = vunpack.c.l.b16 %v325
        %v770 = vunpack.c.h.b16 %v325
        %v771 = vunpack.c.l.b16 %v326
        %v772 = vunpack.c.h.b16 %v326
        %v773 = vunpack.c.l.b16 %v327
        %v774 = vunpack.c.h.b16 %v327
        %v775 = vunpack.c.l.b16 %v328
        %v776 = vunpack.c.h.b16 %v328
        %v777 = vunpack.c.l.b16 %v329
        %v778 = vunpack.c.h.b16 %v329
        %v779 = vunpack.c.l.b16 %v330
        %v780 = vunpack.c.h.b16 %v330
        %v781 = vunpack.c.l.b16 %v331
        %v782 = vunpack.c.h.b16 %v331
        %v783 = vunpack.c.l.b16 %v332
        %v784 = vunpack.c.h.b16 %v332
        %v785 = vunpack.c.l.b16 %v333
        %v786 = vunpack.c.h.b16 %v333
        %v787 = vunpack.c.l.b16 %v334
        %v788 = vunpack.c.h.b16 %v334
        %v789 = vunpack.c.l.b16 %v335
        %v790 = vunpack.c.h.b16 %v335
        %v791 = vpack.c.b16 %v539, %v535
        %v792 = vpack.c.b16 %v540, %v536
        %v793 = vpack.c.b16 %v541, %v537
        %v794 = vpack.c.b16 %v542, %v538
        %v795 = vpack.c.b16 %v547, %v543
        %v796 = vpack.c.b16 %v548, %v544
        %v797 = vpack.c.b16 %v549, %v545
        %v798 = vpack.c.b16 %v550, %v546
        %v799 = vpack.c.b16 %v555, %v551
        %v800 = vpack.c.b16 %v556, %v552
        %v801 = vpack.c.b16 %v557, %v553
        %v802 = vpack.c.b16 %v558, %v554
        %v803 = vpack.c.b16 %v563, %v559
        %v804 = vpack.c.b16 %v564, %v560
        %v805 = vpack.c.b16 %v565, %v561
        %v806 = vpack.c.b16 %v566, %v562
        %v807 = vpack.c.b16 %v571, %v567
        %v808 = vpack.c.b16 %v572, %v568
        %v809 = vpack.c.b16 %v573, %v569
        %v810 = vpack.c.b16 %v574, %v570
        %v811 = vpack.c.b16 %v579, %v575
        %v812 = vpack.c.b16 %v580, %v576
        %v813 = vpack.c.b16 %v581, %v577
        %v814 = vpack.c.b16 %v582, %v578
        %v815 = vpack.c.b16 %v587, %v583
        %v816 = vpack.c.b16 %v588, %v584
        %v817 = vpack.c.b16 %v589, %v585
        %v818 = vpack.c.b16 %v590, %v586
        %v819 = vpack.c.b16 %v595, %v591
        %v820 = vpack.c.b16 %v596, %v592
        %v821 = vpack.c.b16 %v597, %v593
        %v822 = vpack.c.b16 %v598, %v594
        %v823 = vpack.c.b16 %v603, %v599
        %v824 = vpack.c.b16 %v604, %v600
        %v825 = vpack.c.b16 %v605, %v601
        %v826 = vpack.c.b16 %v606, %v602
        %v827 = vpack.c.b16 %v611, %v607
        %v828 = vpack.c.b16 %v612, %v608
        %v829 = vpack.c.b16 %v613, %v609
        %v830 = vpack.c.b16 %v614, %v610
        %v831 = vpack.c.b16 %v619, %v615
        %v832 = vpack.c.b16 %v620, %v616
        %v833 = vpack.c.b16 %v621, %v617
        %v834 = vpack.c.b16 %v622, %v618
        %v835 = vpack.c.b16 %v627, %v623
        %v836 = vpack.c.b16 %v628, %v624
        %v837 = vpack.c.b16 %v629, %v625
        %v838 = vpack.c.b16 %v630, %v626
        %v839 = vpack.c.b16 %v635, %v631
        %v840 = vpack.c.b16 %v636, %v632
        %v841 = vpack.c.b16 %v637, %v633
        %v842 = vpack.c.b16 %v638, %v634
        %v843 = vpack.c.b16 %v643, %v639
        %v844 = vpack.c.b16 %v644, %v640
        %v845 = vpack.c.b16 %v645, %v641
        %v846 = vpack.c.b16 %v646, %v642
        %v847 = vpack.c.b16 %v651, %v647
        %v848 = vpack.c.b16 %v652, %v648
        %v849 = vpack.c.b16 %v653, %v649
        %v850 = vpack.c.b16 %v654, %v650
        %v851 = vpack.c.b16 %v659, %v655
        %v852 = vpack.c.b16 %v660, %v656
        %v853 = vpack.c.b16 %v661, %v657
        %v854 = vpack.c.b16 %v662, %v658
        %v855 = vpack.c.b16 %v667, %v663
        %v856 = vpack.c.b16 %v668, %v664
        %v857 = vpack.c.b16 %v669, %v665
        %v858 = vpack.c.b16 %v670, %v666
        %v859 = vpack.c.b16 %v675, %v671
        %v860 = vpack.c.b16 %v676, %v672
        %v861 = vpack.c.b16 %v677, %v673
        %v862 = vpack.c.b16 %v678, %v674
        %v863 = vpack.c.b16 %v683, %v679
        %v864 = vpack.c.b16 %v684, %v680
        %v865 = vpack.c.b16 %v685, %v681
        %v866 = vpack.c.b16 %v686, %v682
        %v867 = vpack.c.b16 %v691, %v687
        %v868 = vpack.c.b16 %v692, %v688
        %v869 = vpack.c.b16 %v693, %v689
        %v870 = vpack.c.b16 %v694, %v690
        %v871 = vpack.c.b16 %v699, %v695
        %v872 = vpack.c.b16 %v700, %v696
        %v873 = vpack.c.b16 %v701, %v697
        %v874 = vpack.c.b16 %v702, %v698
        %v875 = vpack.c.b16 %v707, %v703
        %v876 = vpack.c.b16 %v708, %v704
        %v877 = vpack.c.b16 %v709, %v705
        %v878 = vpack.c.b16 %v710, %v706
        %v879 = vpack.c.b16 %v715, %v711
        %v880 = vpack.c.b16 %v716, %v712
        %v881 = vpack.c.b16 %v717, %v713
        %v882 = vpack.c.b16 %v718, %v714
        %v883 = vpack.c.b16 %v723, %v719
        %v884 = vpack.c.b16 %v724, %v720
        %v885 = vpack.c.b16 %v725, %v721
        %v886 = vpack.c.b16 %v726, %v722
        %v887 = vpack.c.b16 %v731, %v727
        %v888 = vpack.c.b16 %v732, %v728
        %v889 = vpack.c.b16 %v733, %v729
        %v890 = vpack.c.b16 %v734, %v730
        %v891 = vpack.c.b16 %v739, %v735
        %v892 = vpack.c.b16 %v740, %v736
        %v893 = vpack.c.b16 %v741, %v737
        %v894 = vpack.c.b16 %v742, %v738
        %v895 = vpack.c.b16 %v747, %v743
        %v896 = vpack.c.b16 %v748, %v744
        %v897 = vpack.c.b16 %v749, %v745
        %v898 = vpack.c.b16 %v750, %v746
        %v899 = vpack.c.b16 %v755, %v751
        %v900 = vpack.c.b16 %v756, %v752
        %v901 = vpack.c.b16 %v757, %v753
        %v902 = vpack.c.b16 %v758, %v754
        %v903 = vpack.c.b16 %v763, %v759
        %v904 = vpack.c.b16 %v764, %v760
        %v905 = vpack.c.b16 %v765, %v761
        %v906 = vpack.c.b16 %v766, %v762
        %v907 = vpack.c.b16 %v771, %v767
        %v908 = vpack.c.b16 %v772, %v768
        %v909 = vpack.c.b16 %v773, %v769
        %v910 = vpack.c.b16 %v774, %v770
        %v911 = vpack.c.b16 %v779, %v775
        %v912 = vpack.c.b16 %v780, %v776
        %v913 = vpack.c.b16 %v781, %v777
        %v914 = vpack.c.b16 %v782, %v778
        %v915 = vpack.c.b16 %v787, %v783
        %v916 = vpack.c.b16 %v788, %v784
        %v917 = vpack.c.b16 %v789, %v785
        %v918 = vpack.c.b16 %v790, %v786
        %v1111 = vunpack.c.l.b16 %v336
        %v1112 = vunpack.c.l.b16 %v337
        %v1113 = vunpack.c.l.b16 %v338
        %v1114 = vunpack.c.l.b16 %v339
        %v1115 = vunpack.c.l.b16 %v340
        %v1116 = vunpack.c.l.b16 %v341
        %v1117 = vunpack.c.l.b16 %v342
        %v1118 = vunpack.c.l.b16 %v343
        %v1119 = vunpack.c.l.b16 %v344
        %v1120 = vunpack.c.l.b16 %v345
        %v1121 = vunpack.c.l.b16 %v346
        %v1122 = vunpack.c.l.b16 %v347
        %v1123 = vunpack.c.l.b16 %v348
        %v1124 = vunpack.c.l.b16 %v349
        %v1125 = vunpack.c.l.b16 %v350
        %v1126 = vunpack.c.l.b16 %v351
        %v1127 = vunpack.c.l.b16 %v352
        %v1128 = vunpack.c.l.b16 %v353
        %v1129 = vunpack.c.l.b16 %v354
        %v1130 = vunpack.c.l.b16 %v355
        %v1131 = vunpack.c.l.b16 %v356
        %v1132 = vunpack.c.l.b16 %v357
        %v1133 = vunpack.c.l.b16 %v358
        %v1134 = vunpack.c.l.b16 %v359
        %v1135 = vunpack.c.l.b16 %v360
        %v1136 = vunpack.c.l.b16 %v361
        %v1137 = vunpack.c.l.b16 %v362
        %v1138 = vunpack.c.l.b16 %v363
        %v1139 = vunpack.c.l.b16 %v364
        %v1140 = vunpack.c.l.b16 %v365
        %v1141 = vunpack.c.l.b16 %v366
        %v1142 = vunpack.c.l.b16 %v367
        %v1143 = vunpack.c.l.b16 %v368
        %v1144 = vunpack.c.l.b16 %v369
        %v1145 = vunpack.c.l.b16 %v370
        %v1146 = vunpack.c.l.b16 %v371
        %v1147 = vunpack.c.l.b16 %v372
        %v1148 = vunpack.c.l.b16 %v373
        %v1149 = vunpack.c.l.b16 %v374
        %v1150 = vunpack.c.l.b16 %v375
        %v1151 = vunpack.c.l.b16 %v376
        %v1152 = vunpack.c.l.b16 %v377
        %v1153 = vunpack.c.l.b16 %v378
        %v1154 = vunpack.c.l.b16 %v379
        %v1155 = vunpack.c.l.b16 %v380
        %v1156 = vunpack.c.l.b16 %v381
        %v1157 = vunpack.c.l.b16 %v382
        %v1158 = vunpack.c.l.b16 %v383
        %v1159 = vunpack.c.l.b16 %v384
        %v1160 = vunpack.c.l.b16 %v385
        %v1161 = vunpack.c.l.b16 %v386
        %v1162 = vunpack.c.l.b16 %v387
        %v1163 = vunpack.c.l.b16 %v388
        %v1164 = vunpack.c.l.b16 %v389
        %v1165 = vunpack.c.l.b16 %v390
        %v1166 = vunpack.c.l.b16 %v391
        %v1167 = vunpack.c.l.b16 %v392
        %v1168 = vunpack.c.l.b16 %v393
        %v1169 = vunpack.c.l.b16 %v394
        %v1170 = vunpack.c.l.b16 %v395
        %v1171 = vunpack.c.l.b16 %v396
        %v1172 = vunpack.c.l.b16 %v397
        %v1173 = vunpack.c.l.b16 %v398
        %v1174 = vunpack.c.l.b16 %v399
        %v1175 = vpack.c.b16 %v1112, %v1111
        %v1176 = vpack.c.b16 %v1114, %v1113
        %v1177 = vpack.c.b16 %v1116, %v1115
        %v1178 = vpack.c.b16 %v1118, %v1117
        %v1179 = vpack.c.b16 %v1120, %v1119
        %v1180 = vpack.c.b16 %v1122, %v1121
        %v1181 = vpack.c.b16 %v1124, %v1123
        %v1182 = vpack.c.b16 %v1126, %v1125
        %v1183 = vpack.c.b16 %v1128, %v1127
        %v1184 = vpack.c.b16 %v1130, %v1129
        %v1185 = vpack.c.b16 %v1132, %v1131
        %v1186 = vpack.c.b16 %v1134, %v1133
        %v1187 = vpack.c.b16 %v1136, %v1135
        %v1188 = vpack.c.b16 %v1138, %v1137
        %v1189 = vpack.c.b16 %v1140, %v1139
        %v1190 = vpack.c.b16 %v1142, %v1141
        %v1191 = vpack.c.b16 %v1144, %v1143
        %v1192 = vpack.c.b16 %v1146, %v1145
        %v1193 = vpack.c.b16 %v1148, %v1147
        %v1194 = vpack.c.b16 %v1150, %v1149
        %v1195 = vpack.c.b16 %v1152, %v1151
        %v1196 = vpack.c.b16 %v1154, %v1153
        %v1197 = vpack.c.b16 %v1156, %v1155
        %v1198 = vpack.c.b16 %v1158, %v1157
        %v1199 = vpack.c.b16 %v1160, %v1159
        %v1200 = vpack.c.b16 %v1162, %v1161
        %v1201 = vpack.c.b16 %v1164, %v1163
        %v1202 = vpack.c.b16 %v1166, %v1165
        %v1203 = vpack.c.b16 %v1168, %v1167
        %v1204 = vpack.c.b16 %v1170, %v1169
        %v1205 = vpack.c.b16 %v1172, %v1171
        %v1206 = vpack.c.b16 %v1174, %v1173
        %1239 = vmatprep.subr.bf16.mxu0 0
        %1240 = vmatpush1.bf16.msra.mxu0 %v1175
        %1241 = vmatprep.subr.bf16.mxu0 0
        %1242 = vmatpush1.bf16.msra.mxu0 %v1176
        %1243 = vmatprep.subr.bf16.mxu0 0
        %1244 = vmatpush1.bf16.msra.mxu0 %v1177
        %1245 = vmatprep.subr.bf16.mxu0 0
        %1246 = vmatpush1.bf16.msra.mxu0 %v1178
        %1247 = vmatprep.subr.bf16.mxu0 0
        %1248 = vmatpush1.bf16.msra.mxu0 %v1179
        %1249 = vmatprep.subr.bf16.mxu0 0
        %1250 = vmatpush1.bf16.msra.mxu0 %v1180
        %1251 = vmatprep.subr.bf16.mxu0 0
        %1252 = vmatpush1.bf16.msra.mxu0 %v1181
        %1253 = vmatprep.subr.bf16.mxu0 0
        %1254 = vmatpush1.bf16.msra.mxu0 %v1182
        %1255 = vmatprep.subr.bf16.mxu0 0
        %1256 = vmatpush1.bf16.msra.mxu0 %v1183
        %1257 = vmatprep.subr.bf16.mxu0 0
        %1258 = vmatpush1.bf16.msra.mxu0 %v1184
        %1259 = vmatprep.subr.bf16.mxu0 0
        %1260 = vmatpush1.bf16.msra.mxu0 %v1185
        %1261 = vmatprep.subr.bf16.mxu0 0
        %1262 = vmatpush1.bf16.msra.mxu0 %v1186
        %1263 = vmatprep.subr.bf16.mxu0 0
        %1264 = vmatpush1.bf16.msra.mxu0 %v1187
        %1265 = vmatprep.subr.bf16.mxu0 0
        %1266 = vmatpush1.bf16.msra.mxu0 %v1188
        %1267 = vmatprep.subr.bf16.mxu0 0
        %1268 = vmatpush1.bf16.msra.mxu0 %v1189
        %1269 = vmatprep.subr.bf16.mxu0 0
        %1270 = vmatpush1.bf16.msra.mxu0 %v1190
        %1271 = vmatprep.mubr.bf16.mxu0 %v792
        %1272 = vmatmul.mubr.bf16.gmra.mrb[0].mxu0 %v791
        %v1273 = vpop.f32.mrb[0].mxu0
        %v1274 = vadd.f32 %v405, %v1273
        %v1275 = vpop.f32.mrb[0].mxu0
        %v1276 = vpop.f32.mrb[0].mxu0
        %v1277 = vadd.f32 %v405, %v1276
        %v1278 = vpop.f32.mrb[0].mxu0
        %1279 = vmatprep.mubr.bf16.mxu0 %v796
        %1280 = vmatmul.mubr.bf16.gmra.mrb[0].mxu0 %v795
        %v1281 = vpop.f32.mrb[0].mxu0
        %v1282 = vadd.f32 %v405, %v1281
        %v1283 = vpop.f32.mrb[0].mxu0
        %v1284 = vpop.f32.mrb[0].mxu0
        %v1285 = vadd.f32 %v405, %v1284
        %v1286 = vpop.f32.mrb[0].mxu0
        %1287 = vmatprep.mubr.bf16.mxu0 %v800
        %1288 = vmatmul.mubr.bf16.gmra.mrb[0].mxu0 %v799
        %v1289 = vpop.f32.mrb[0].mxu0
        %v1290 = vadd.f32 %v405, %v1289
        %v1291 = vpop.f32.mrb[0].mxu0
        %v1292 = vpop.f32.mrb[0].mxu0
        %v1293 = vadd.f32 %v405, %v1292
        %v1294 = vpop.f32.mrb[0].mxu0
        %1295 = vmatprep.mubr.bf16.mxu0 %v804
        %1296 = vmatmul.mubr.bf16.gmra.mrb[0].mxu0 %v803
        %v1297 = vpop.f32.mrb[0].mxu0
        %v1298 = vadd.f32 %v405, %v1297
        %v1299 = vpop.f32.mrb[0].mxu0
        %v1300 = vpop.f32.mrb[0].mxu0
        %v1301 = vadd.f32 %v405, %v1300
        %v1302 = vpop.f32.mrb[0].mxu0
        %1303 = vmatprep.mubr.bf16.mxu0 %v808
        %1304 = vmatmul.mubr.bf16.gmra.mrb[0].mxu0 %v807
        %v1305 = vpop.f32.mrb[0].mxu0
        %v1306 = vadd.f32 %v405, %v1305
        %v1307 = vpop.f32.mrb[0].mxu0
        %v1308 = vpop.f32.mrb[0].mxu0
        %v1309 = vadd.f32 %v405, %v1308
        %v1310 = vpop.f32.mrb[0].mxu0
        %1311 = vmatprep.mubr.bf16.mxu0 %v812
        %1312 = vmatmul.mubr.bf16.gmra.mrb[0].mxu0 %v811
        %v1313 = vpop.f32.mrb[0].mxu0
        %v1314 = vadd.f32 %v405, %v1313
        %v1315 = vpop.f32.mrb[0].mxu0
        %v1316 = vpop.f32.mrb[0].mxu0
        %v1317 = vadd.f32 %v405, %v1316
        %v1318 = vpop.f32.mrb[0].mxu0
        %1319 = vmatprep.mubr.bf16.mxu0 %v816
        %1320 = vmatmul.mubr.bf16.gmra.mrb[0].mxu0 %v815
        %v1321 = vpop.f32.mrb[0].mxu0
        %v1322 = vadd.f32 %v405, %v1321
        %v1323 = vpop.f32.mrb[0].mxu0
        %v1324 = vpop.f32.mrb[0].mxu0
        %v1325 = vadd.f32 %v405, %v1324
        %v1326 = vpop.f32.mrb[0].mxu0
        %1327 = vmatprep.mubr.bf16.mxu0 %v820
        %1328 = vmatmul.mubr.bf16.gmra.mrb[0].mxu0 %v819
        %v1329 = vpop.f32.mrb[0].mxu0
        %v1330 = vadd.f32 %v405, %v1329
        %v1331 = vpop.f32.mrb[0].mxu0
        %v1332 = vpop.f32.mrb[0].mxu0
        %v1333 = vadd.f32 %v405, %v1332
        %v1334 = vpop.f32.mrb[0].mxu0
        %1335 = vmatprep.mubr.bf16.mxu0 %v824
        %1336 = vmatmul.mubr.bf16.gmra.mrb[0].mxu0 %v823
        %v1337 = vpop.f32.mrb[0].mxu0
        %v1338 = vadd.f32 %v405, %v1337
        %v1339 = vpop.f32.mrb[0].mxu0
        %v1340 = vpop.f32.mrb[0].mxu0
        %v1341 = vadd.f32 %v405, %v1340
        %v1342 = vpop.f32.mrb[0].mxu0
        %1343 = vmatprep.mubr.bf16.mxu0 %v828
        %1344 = vmatmul.mubr.bf16.gmra.mrb[0].mxu0 %v827
        %v1345 = vpop.f32.mrb[0].mxu0
        %v1346 = vadd.f32 %v405, %v1345
        %v1347 = vpop.f32.mrb[0].mxu0
        %v1348 = vpop.f32.mrb[0].mxu0
        %v1349 = vadd.f32 %v405, %v1348
        %v1350 = vpop.f32.mrb[0].mxu0
        %1351 = vmatprep.mubr.bf16.mxu0 %v832
        %1352 = vmatmul.mubr.bf16.gmra.mrb[0].mxu0 %v831
        %v1353 = vpop.f32.mrb[0].mxu0
        %v1354 = vadd.f32 %v405, %v1353
        %v1355 = vpop.f32.mrb[0].mxu0
        %v1356 = vpop.f32.mrb[0].mxu0
        %v1357 = vadd.f32 %v405, %v1356
        %v1358 = vpop.f32.mrb[0].mxu0
        %1359 = vmatprep.mubr.bf16.mxu0 %v836
        %1360 = vmatmul.mubr.bf16.gmra.mrb[0].mxu0 %v835
        %v1361 = vpop.f32.mrb[0].mxu0
        %v1362 = vadd.f32 %v405, %v1361
        %v1363 = vpop.f32.mrb[0].mxu0
        %v1364 = vpop.f32.mrb[0].mxu0
        %v1365 = vadd.f32 %v405, %v1364
        %v1366 = vpop.f32.mrb[0].mxu0
        %1367 = vmatprep.mubr.bf16.mxu0 %v840
        %1368 = vmatmul.mubr.bf16.gmra.mrb[0].mxu0 %v839
        %v1369 = vpop.f32.mrb[0].mxu0
        %v1370 = vadd.f32 %v405, %v1369
        %v1371 = vpop.f32.mrb[0].mxu0
        %v1372 = vpop.f32.mrb[0].mxu0
        %v1373 = vadd.f32 %v405, %v1372
        %v1374 = vpop.f32.mrb[0].mxu0
        %1375 = vmatprep.mubr.bf16.mxu0 %v844
        %1376 = vmatmul.mubr.bf16.gmra.mrb[0].mxu0 %v843
        %v1377 = vpop.f32.mrb[0].mxu0
        %v1378 = vadd.f32 %v405, %v1377
        %v1379 = vpop.f32.mrb[0].mxu0
        %v1380 = vpop.f32.mrb[0].mxu0
        %v1381 = vadd.f32 %v405, %v1380
        %v1382 = vpop.f32.mrb[0].mxu0
        %1383 = vmatprep.mubr.bf16.mxu0 %v848
        %1384 = vmatmul.mubr.bf16.gmra.mrb[0].mxu0 %v847
        %v1385 = vpop.f32.mrb[0].mxu0
        %v1386 = vadd.f32 %v405, %v1385
        %v1387 = vpop.f32.mrb[0].mxu0
        %v1388 = vpop.f32.mrb[0].mxu0
        %v1389 = vadd.f32 %v405, %v1388
        %v1390 = vpop.f32.mrb[0].mxu0
        %1391 = vmatprep.mubr.bf16.mxu0 %v852
        %1392 = vmatmul.mubr.bf16.gmra.mrb[0].mxu0 %v851
        %v1393 = vpop.f32.mrb[0].mxu0
        %v1394 = vadd.f32 %v405, %v1393
        %v1395 = vpop.f32.mrb[0].mxu0
        %v1396 = vpop.f32.mrb[0].mxu0
        %v1397 = vadd.f32 %v405, %v1396
        %v1398 = vpop.f32.mrb[0].mxu0
        %1399 = vmatprep.mubr.bf16.mxu0 %v856
        %1400 = vmatmul.mubr.bf16.gmra.mrb[0].mxu0 %v855
        %v1401 = vpop.f32.mrb[0].mxu0
        %v1402 = vadd.f32 %v405, %v1401
        %v1403 = vpop.f32.mrb[0].mxu0
        %v1404 = vpop.f32.mrb[0].mxu0
        %v1405 = vadd.f32 %v405, %v1404
        %v1406 = vpop.f32.mrb[0].mxu0
        %1407 = vmatprep.mubr.bf16.mxu0 %v860
        %1408 = vmatmul.mubr.bf16.gmra.mrb[0].mxu0 %v859
        %v1409 = vpop.f32.mrb[0].mxu0
        %v1410 = vadd.f32 %v405, %v1409
        %v1411 = vpop.f32.mrb[0].mxu0
        %v1412 = vpop.f32.mrb[0].mxu0
        %v1413 = vadd.f32 %v405, %v1412
        %v1414 = vpop.f32.mrb[0].mxu0
        %1415 = vmatprep.mubr.bf16.mxu0 %v864
        %1416 = vmatmul.mubr.bf16.gmra.mrb[0].mxu0 %v863
        %v1417 = vpop.f32.mrb[0].mxu0
        %v1418 = vadd.f32 %v405, %v1417
        %v1419 = vpop.f32.mrb[0].mxu0
        %v1420 = vpop.f32.mrb[0].mxu0
        %v1421 = vadd.f32 %v405, %v1420
        %v1422 = vpop.f32.mrb[0].mxu0
        %1423 = vmatprep.mubr.bf16.mxu0 %v868
        %1424 = vmatmul.mubr.bf16.gmra.mrb[0].mxu0 %v867
        %v1425 = vpop.f32.mrb[0].mxu0
        %v1426 = vadd.f32 %v405, %v1425
        %v1427 = vpop.f32.mrb[0].mxu0
        %v1428 = vpop.f32.mrb[0].mxu0
        %v1429 = vadd.f32 %v405, %v1428
        %v1430 = vpop.f32.mrb[0].mxu0
        %1431 = vmatprep.mubr.bf16.mxu0 %v872
        %1432 = vmatmul.mubr.bf16.gmra.mrb[0].mxu0 %v871
        %v1433 = vpop.f32.mrb[0].mxu0
        %v1434 = vadd.f32 %v405, %v1433
        %v1435 = vpop.f32.mrb[0].mxu0
        %v1436 = vpop.f32.mrb[0].mxu0
        %v1437 = vadd.f32 %v405, %v1436
        %v1438 = vpop.f32.mrb[0].mxu0
        %1439 = vmatprep.mubr.bf16.mxu0 %v876
        %1440 = vmatmul.mubr.bf16.gmra.mrb[0].mxu0 %v875
        %v1441 = vpop.f32.mrb[0].mxu0
        %v1442 = vadd.f32 %v405, %v1441
        %v1443 = vpop.f32.mrb[0].mxu0
        %v1444 = vpop.f32.mrb[0].mxu0
        %v1445 = vadd.f32 %v405, %v1444
        %v1446 = vpop.f32.mrb[0].mxu0
        %1447 = vmatprep.mubr.bf16.mxu0 %v880
        %1448 = vmatmul.mubr.bf16.gmra.mrb[0].mxu0 %v879
        %v1449 = vpop.f32.mrb[0].mxu0
        %v1450 = vadd.f32 %v405, %v1449
        %v1451 = vpop.f32.mrb[0].mxu0
        %v1452 = vpop.f32.mrb[0].mxu0
        %v1453 = vadd.f32 %v405, %v1452
        %v1454 = vpop.f32.mrb[0].mxu0
        %1455 = vmatprep.mubr.bf16.mxu0 %v884
        %1456 = vmatmul.mubr.bf16.gmra.mrb[0].mxu0 %v883
        %v1457 = vpop.f32.mrb[0].mxu0
        %v1458 = vadd.f32 %v405, %v1457
        %v1459 = vpop.f32.mrb[0].mxu0
        %v1460 = vpop.f32.mrb[0].mxu0
        %v1461 = vadd.f32 %v405, %v1460
        %v1462 = vpop.f32.mrb[0].mxu0
        %1463 = vmatprep.mubr.bf16.mxu0 %v888
        %1464 = vmatmul.mubr.bf16.gmra.mrb[0].mxu0 %v887
        %v1465 = vpop.f32.mrb[0].mxu0
        %v1466 = vadd.f32 %v405, %v1465
        %v1467 = vpop.f32.mrb[0].mxu0
        %v1468 = vpop.f32.mrb[0].mxu0
        %v1469 = vadd.f32 %v405, %v1468
        %v1470 = vpop.f32.mrb[0].mxu0
        %1471 = vmatprep.mubr.bf16.mxu0 %v892
        %1472 = vmatmul.mubr.bf16.gmra.mrb[0].mxu0 %v891
        %v1473 = vpop.f32.mrb[0].mxu0
        %v1474 = vadd.f32 %v405, %v1473
        %v1475 = vpop.f32.mrb[0].mxu0
        %v1476 = vpop.f32.mrb[0].mxu0
        %v1477 = vadd.f32 %v405, %v1476
        %v1478 = vpop.f32.mrb[0].mxu0
        %1479 = vmatprep.mubr.bf16.mxu0 %v896
        %1480 = vmatmul.mubr.bf16.gmra.mrb[0].mxu0 %v895
        %v1481 = vpop.f32.mrb[0].mxu0
        %v1482 = vadd.f32 %v405, %v1481
        %v1483 = vpop.f32.mrb[0].mxu0
        %v1484 = vpop.f32.mrb[0].mxu0
        %v1485 = vadd.f32 %v405, %v1484
        %v1486 = vpop.f32.mrb[0].mxu0
        %1487 = vmatprep.mubr.bf16.mxu0 %v900
        %1488 = vmatmul.mubr.bf16.gmra.mrb[0].mxu0 %v899
        %v1489 = vpop.f32.mrb[0].mxu0
        %v1490 = vadd.f32 %v405, %v1489
        %v1491 = vpop.f32.mrb[0].mxu0
        %v1492 = vpop.f32.mrb[0].mxu0
        %v1493 = vadd.f32 %v405, %v1492
        %v1494 = vpop.f32.mrb[0].mxu0
        %1495 = vmatprep.mubr.bf16.mxu0 %v904
        %1496 = vmatmul.mubr.bf16.gmra.mrb[0].mxu0 %v903
        %v1497 = vpop.f32.mrb[0].mxu0
        %v1498 = vadd.f32 %v405, %v1497
        %v1499 = vpop.f32.mrb[0].mxu0
        %v1500 = vpop.f32.mrb[0].mxu0
        %v1501 = vadd.f32 %v405, %v1500
        %v1502 = vpop.f32.mrb[0].mxu0
        %1503 = vmatprep.mubr.bf16.mxu0 %v908
        %1504 = vmatmul.mubr.bf16.gmra.mrb[0].mxu0 %v907
        %v1505 = vpop.f32.mrb[0].mxu0
        %v1506 = vadd.f32 %v405, %v1505
        %v1507 = vpop.f32.mrb[0].mxu0
        %v1508 = vpop.f32.mrb[0].mxu0
        %v1509 = vadd.f32 %v405, %v1508
        %v1510 = vpop.f32.mrb[0].mxu0
        %1511 = vmatprep.mubr.bf16.mxu0 %v912
        %1512 = vmatmul.mubr.bf16.gmra.mrb[0].mxu0 %v911
        %v1513 = vpop.f32.mrb[0].mxu0
        %v1514 = vadd.f32 %v405, %v1513
        %v1515 = vpop.f32.mrb[0].mxu0
        %v1516 = vpop.f32.mrb[0].mxu0
        %v1517 = vadd.f32 %v405, %v1516
        %v1518 = vpop.f32.mrb[0].mxu0
        %1519 = vmatprep.mubr.bf16.mxu0 %v916
        %1520 = vmatmul.mubr.bf16.gmra.mrb[0].mxu0 %v915
        %v1521 = vpop.f32.mrb[0].mxu0
        %v1522 = vadd.f32 %v405, %v1521
        %v1523 = vpop.f32.mrb[0].mxu0
        %v1524 = vpop.f32.mrb[0].mxu0
        %v1525 = vadd.f32 %v405, %v1524
        %v1526 = vpop.f32.mrb[0].mxu0
        %1527 = vdwg.mxu0
        %1528 = vmatprep.subr.bf16.mxu0 0
        %1529 = vmatpush1.bf16.msra.mxu0 %v1191
        %1530 = vmatprep.subr.bf16.mxu0 0
        %1531 = vmatpush1.bf16.msra.mxu0 %v1192
        %1532 = vmatprep.subr.bf16.mxu0 0
        %1533 = vmatpush1.bf16.msra.mxu0 %v1193
        %1534 = vmatprep.subr.bf16.mxu0 0
        %1535 = vmatpush1.bf16.msra.mxu0 %v1194
        %1536 = vmatprep.subr.bf16.mxu0 0
        %1537 = vmatpush1.bf16.msra.mxu0 %v1195
        %1538 = vmatprep.subr.bf16.mxu0 0
        %1539 = vmatpush1.bf16.msra.mxu0 %v1196
        %1540 = vmatprep.subr.bf16.mxu0 0
        %1541 = vmatpush1.bf16.msra.mxu0 %v1197
        %1542 = vmatprep.subr.bf16.mxu0 0
        %1543 = vmatpush1.bf16.msra.mxu0 %v1198
        %1544 = vmatprep.subr.bf16.mxu0 0
        %1545 = vmatpush1.bf16.msra.mxu0 %v1199
        %1546 = vmatprep.subr.bf16.mxu0 0
        %1547 = vmatpush1.bf16.msra.mxu0 %v1200
        %1548 = vmatprep.subr.bf16.mxu0 0
        %1549 = vmatpush1.bf16.msra.mxu0 %v1201
        %1550 = vmatprep.subr.bf16.mxu0 0
        %1551 = vmatpush1.bf16.msra.mxu0 %v1202
        %1552 = vmatprep.subr.bf16.mxu0 0
        %1553 = vmatpush1.bf16.msra.mxu0 %v1203
        %1554 = vmatprep.subr.bf16.mxu0 0
        %1555 = vmatpush1.bf16.msra.mxu0 %v1204
        %1556 = vmatprep.subr.bf16.mxu0 0
        %1557 = vmatpush1.bf16.msra.mxu0 %v1205
        %1558 = vmatprep.subr.bf16.mxu0 0
        %1559 = vmatpush1.bf16.msra.mxu0 %v1206
        %1560 = vmatprep.mubr.bf16.mxu0 %v794
        %1561 = vmatmul.mubr.bf16.gmra.mrb[0].mxu0 %v793
        %v1562 = vpop.f32.mrb[0].mxu0
        %v1563 = vadd.f32 %v1274, %v1562
        %v1564 = vpop.f32.mrb[0].mxu0
        %v1565 = vpop.f32.mrb[0].mxu0
        %v1566 = vadd.f32 %v1277, %v1565
        %v1567 = vpop.f32.mrb[0].mxu0
        %1568 = vmatprep.mubr.bf16.mxu0 %v798
        %1569 = vmatmul.mubr.bf16.gmra.mrb[0].mxu0 %v797
        %v1570 = vpop.f32.mrb[0].mxu0
        %v1571 = vadd.f32 %v1282, %v1570
        %v1572 = vpop.f32.mrb[0].mxu0
        %v1573 = vpop.f32.mrb[0].mxu0
        %v1574 = vadd.f32 %v1285, %v1573
        %v1575 = vpop.f32.mrb[0].mxu0
        %1576 = vmatprep.mubr.bf16.mxu0 %v802
        %1577 = vmatmul.mubr.bf16.gmra.mrb[0].mxu0 %v801
        %v1578 = vpop.f32.mrb[0].mxu0
        %v1579 = vadd.f32 %v1290, %v1578
        %v1580 = vpop.f32.mrb[0].mxu0
        %v1581 = vpop.f32.mrb[0].mxu0
        %v1582 = vadd.f32 %v1293, %v1581
        %v1583 = vpop.f32.mrb[0].mxu0
        %1584 = vmatprep.mubr.bf16.mxu0 %v806
        %1585 = vmatmul.mubr.bf16.gmra.mrb[0].mxu0 %v805
        %v1586 = vpop.f32.mrb[0].mxu0
        %v1587 = vadd.f32 %v1298, %v1586
        %v1588 = vpop.f32.mrb[0].mxu0
        %v1589 = vpop.f32.mrb[0].mxu0
        %v1590 = vadd.f32 %v1301, %v1589
        %v1591 = vpop.f32.mrb[0].mxu0
        %1592 = vmatprep.mubr.bf16.mxu0 %v810
        %1593 = vmatmul.mubr.bf16.gmra.mrb[0].mxu0 %v809
        %v1594 = vpop.f32.mrb[0].mxu0
        %v1595 = vadd.f32 %v1306, %v1594
        %v1596 = vpop.f32.mrb[0].mxu0
        %v1597 = vpop.f32.mrb[0].mxu0
        %v1598 = vadd.f32 %v1309, %v1597
        %v1599 = vpop.f32.mrb[0].mxu0
        %1600 = vmatprep.mubr.bf16.mxu0 %v814
        %1601 = vmatmul.mubr.bf16.gmra.mrb[0].mxu0 %v813
        %v1602 = vpop.f32.mrb[0].mxu0
        %v1603 = vadd.f32 %v1314, %v1602
        %v1604 = vpop.f32.mrb[0].mxu0
        %v1605 = vpop.f32.mrb[0].mxu0
        %v1606 = vadd.f32 %v1317, %v1605
        %v1607 = vpop.f32.mrb[0].mxu0
        %1608 = vmatprep.mubr.bf16.mxu0 %v818
        %1609 = vmatmul.mubr.bf16.gmra.mrb[0].mxu0 %v817
        %v1610 = vpop.f32.mrb[0].mxu0
        %v1611 = vadd.f32 %v1322, %v1610
        %v1612 = vpop.f32.mrb[0].mxu0
        %v1613 = vpop.f32.mrb[0].mxu0
        %v1614 = vadd.f32 %v1325, %v1613
        %v1615 = vpop.f32.mrb[0].mxu0
        %1616 = vmatprep.mubr.bf16.mxu0 %v822
        %1617 = vmatmul.mubr.bf16.gmra.mrb[0].mxu0 %v821
        %v1618 = vpop.f32.mrb[0].mxu0
        %v1619 = vadd.f32 %v1330, %v1618
        %v1620 = vpop.f32.mrb[0].mxu0
        %v1621 = vpop.f32.mrb[0].mxu0
        %v1622 = vadd.f32 %v1333, %v1621
        %v1623 = vpop.f32.mrb[0].mxu0
        %1624 = vmatprep.mubr.bf16.mxu0 %v826
        %1625 = vmatmul.mubr.bf16.gmra.mrb[0].mxu0 %v825
        %v1626 = vpop.f32.mrb[0].mxu0
        %v1627 = vadd.f32 %v1338, %v1626
        %v1628 = vpop.f32.mrb[0].mxu0
        %v1629 = vpop.f32.mrb[0].mxu0
        %v1630 = vadd.f32 %v1341, %v1629
        %v1631 = vpop.f32.mrb[0].mxu0
        %1632 = vmatprep.mubr.bf16.mxu0 %v830
        %1633 = vmatmul.mubr.bf16.gmra.mrb[0].mxu0 %v829
        %v1634 = vpop.f32.mrb[0].mxu0
        %v1635 = vadd.f32 %v1346, %v1634
        %v1636 = vpop.f32.mrb[0].mxu0
        %v1637 = vpop.f32.mrb[0].mxu0
        %v1638 = vadd.f32 %v1349, %v1637
        %v1639 = vpop.f32.mrb[0].mxu0
        %1640 = vmatprep.mubr.bf16.mxu0 %v834
        %1641 = vmatmul.mubr.bf16.gmra.mrb[0].mxu0 %v833
        %v1642 = vpop.f32.mrb[0].mxu0
        %v1643 = vadd.f32 %v1354, %v1642
        %v1644 = vpop.f32.mrb[0].mxu0
        %v1645 = vpop.f32.mrb[0].mxu0
        %v1646 = vadd.f32 %v1357, %v1645
        %v1647 = vpop.f32.mrb[0].mxu0
        %1648 = vmatprep.mubr.bf16.mxu0 %v838
        %1649 = vmatmul.mubr.bf16.gmra.mrb[0].mxu0 %v837
        %v1650 = vpop.f32.mrb[0].mxu0
        %v1651 = vadd.f32 %v1362, %v1650
        %v1652 = vpop.f32.mrb[0].mxu0
        %v1653 = vpop.f32.mrb[0].mxu0
        %v1654 = vadd.f32 %v1365, %v1653
        %v1655 = vpop.f32.mrb[0].mxu0
        %1656 = vmatprep.mubr.bf16.mxu0 %v842
        %1657 = vmatmul.mubr.bf16.gmra.mrb[0].mxu0 %v841
        %v1658 = vpop.f32.mrb[0].mxu0
        %v1659 = vadd.f32 %v1370, %v1658
        %v1660 = vpop.f32.mrb[0].mxu0
        %v1661 = vpop.f32.mrb[0].mxu0
        %v1662 = vadd.f32 %v1373, %v1661
        %v1663 = vpop.f32.mrb[0].mxu0
        %1664 = vmatprep.mubr.bf16.mxu0 %v846
        %1665 = vmatmul.mubr.bf16.gmra.mrb[0].mxu0 %v845
        %v1666 = vpop.f32.mrb[0].mxu0
        %v1667 = vadd.f32 %v1378, %v1666
        %v1668 = vpop.f32.mrb[0].mxu0
        %v1669 = vpop.f32.mrb[0].mxu0
        %v1670 = vadd.f32 %v1381, %v1669
        %v1671 = vpop.f32.mrb[0].mxu0
        %1672 = vmatprep.mubr.bf16.mxu0 %v850
        %1673 = vmatmul.mubr.bf16.gmra.mrb[0].mxu0 %v849
        %v1674 = vpop.f32.mrb[0].mxu0
        %v1675 = vadd.f32 %v1386, %v1674
        %v1676 = vpop.f32.mrb[0].mxu0
        %v1677 = vpop.f32.mrb[0].mxu0
        %v1678 = vadd.f32 %v1389, %v1677
        %v1679 = vpop.f32.mrb[0].mxu0
        %1680 = vmatprep.mubr.bf16.mxu0 %v854
        %1681 = vmatmul.mubr.bf16.gmra.mrb[0].mxu0 %v853
        %v1682 = vpop.f32.mrb[0].mxu0
        %v1683 = vadd.f32 %v1394, %v1682
        %v1684 = vpop.f32.mrb[0].mxu0
        %v1685 = vpop.f32.mrb[0].mxu0
        %v1686 = vadd.f32 %v1397, %v1685
        %v1687 = vpop.f32.mrb[0].mxu0
        %1688 = vmatprep.mubr.bf16.mxu0 %v858
        %1689 = vmatmul.mubr.bf16.gmra.mrb[0].mxu0 %v857
        %v1690 = vpop.f32.mrb[0].mxu0
        %v1691 = vadd.f32 %v1402, %v1690
        %v1692 = vpop.f32.mrb[0].mxu0
        %v1693 = vpop.f32.mrb[0].mxu0
        %v1694 = vadd.f32 %v1405, %v1693
        %v1695 = vpop.f32.mrb[0].mxu0
        %1696 = vmatprep.mubr.bf16.mxu0 %v862
        %1697 = vmatmul.mubr.bf16.gmra.mrb[0].mxu0 %v861
        %v1698 = vpop.f32.mrb[0].mxu0
        %v1699 = vadd.f32 %v1410, %v1698
        %v1700 = vpop.f32.mrb[0].mxu0
        %v1701 = vpop.f32.mrb[0].mxu0
        %v1702 = vadd.f32 %v1413, %v1701
        %v1703 = vpop.f32.mrb[0].mxu0
        %1704 = vmatprep.mubr.bf16.mxu0 %v866
        %1705 = vmatmul.mubr.bf16.gmra.mrb[0].mxu0 %v865
        %v1706 = vpop.f32.mrb[0].mxu0
        %v1707 = vadd.f32 %v1418, %v1706
        %v1708 = vpop.f32.mrb[0].mxu0
        %v1709 = vpop.f32.mrb[0].mxu0
        %v1710 = vadd.f32 %v1421, %v1709
        %v1711 = vpop.f32.mrb[0].mxu0
        %1712 = vmatprep.mubr.bf16.mxu0 %v870
        %1713 = vmatmul.mubr.bf16.gmra.mrb[0].mxu0 %v869
        %v1714 = vpop.f32.mrb[0].mxu0
        %v1715 = vadd.f32 %v1426, %v1714
        %v1716 = vpop.f32.mrb[0].mxu0
        %v1717 = vpop.f32.mrb[0].mxu0
        %v1718 = vadd.f32 %v1429, %v1717
        %v1719 = vpop.f32.mrb[0].mxu0
        %1720 = vmatprep.mubr.bf16.mxu0 %v874
        %1721 = vmatmul.mubr.bf16.gmra.mrb[0].mxu0 %v873
        %v1722 = vpop.f32.mrb[0].mxu0
        %v1723 = vadd.f32 %v1434, %v1722
        %v1724 = vpop.f32.mrb[0].mxu0
        %v1725 = vpop.f32.mrb[0].mxu0
        %v1726 = vadd.f32 %v1437, %v1725
        %v1727 = vpop.f32.mrb[0].mxu0
        %1728 = vmatprep.mubr.bf16.mxu0 %v878
        %1729 = vmatmul.mubr.bf16.gmra.mrb[0].mxu0 %v877
        %v1730 = vpop.f32.mrb[0].mxu0
        %v1731 = vadd.f32 %v1442, %v1730
        %v1732 = vpop.f32.mrb[0].mxu0
        %v1733 = vpop.f32.mrb[0].mxu0
        %v1734 = vadd.f32 %v1445, %v1733
        %v1735 = vpop.f32.mrb[0].mxu0
        %1736 = vmatprep.mubr.bf16.mxu0 %v882
        %1737 = vmatmul.mubr.bf16.gmra.mrb[0].mxu0 %v881
        %v1738 = vpop.f32.mrb[0].mxu0
        %v1739 = vadd.f32 %v1450, %v1738
        %v1740 = vpop.f32.mrb[0].mxu0
        %v1741 = vpop.f32.mrb[0].mxu0
        %v1742 = vadd.f32 %v1453, %v1741
        %v1743 = vpop.f32.mrb[0].mxu0
        %1744 = vmatprep.mubr.bf16.mxu0 %v886
        %1745 = vmatmul.mubr.bf16.gmra.mrb[0].mxu0 %v885
        %v1746 = vpop.f32.mrb[0].mxu0
        %v1747 = vadd.f32 %v1458, %v1746
        %v1748 = vpop.f32.mrb[0].mxu0
        %v1749 = vpop.f32.mrb[0].mxu0
        %v1750 = vadd.f32 %v1461, %v1749
        %v1751 = vpop.f32.mrb[0].mxu0
        %1752 = vmatprep.mubr.bf16.mxu0 %v890
        %1753 = vmatmul.mubr.bf16.gmra.mrb[0].mxu0 %v889
        %v1754 = vpop.f32.mrb[0].mxu0
        %v1755 = vadd.f32 %v1466, %v1754
        %v1756 = vpop.f32.mrb[0].mxu0
        %v1757 = vpop.f32.mrb[0].mxu0
        %v1758 = vadd.f32 %v1469, %v1757
        %v1759 = vpop.f32.mrb[0].mxu0
        %1760 = vmatprep.mubr.bf16.mxu0 %v894
        %1761 = vmatmul.mubr.bf16.gmra.mrb[0].mxu0 %v893
        %v1762 = vpop.f32.mrb[0].mxu0
        %v1763 = vadd.f32 %v1474, %v1762
        %v1764 = vpop.f32.mrb[0].mxu0
        %v1765 = vpop.f32.mrb[0].mxu0
        %v1766 = vadd.f32 %v1477, %v1765
        %v1767 = vpop.f32.mrb[0].mxu0
        %1768 = vmatprep.mubr.bf16.mxu0 %v898
        %1769 = vmatmul.mubr.bf16.gmra.mrb[0].mxu0 %v897
        %v1770 = vpop.f32.mrb[0].mxu0
        %v1771 = vadd.f32 %v1482, %v1770
        %v1772 = vpop.f32.mrb[0].mxu0
        %v1773 = vpop.f32.mrb[0].mxu0
        %v1774 = vadd.f32 %v1485, %v1773
        %v1775 = vpop.f32.mrb[0].mxu0
        %1776 = vmatprep.mubr.bf16.mxu0 %v902
        %1777 = vmatmul.mubr.bf16.gmra.mrb[0].mxu0 %v901
        %v1778 = vpop.f32.mrb[0].mxu0
        %v1779 = vadd.f32 %v1490, %v1778
        %v1780 = vpop.f32.mrb[0].mxu0
        %v1781 = vpop.f32.mrb[0].mxu0
        %v1782 = vadd.f32 %v1493, %v1781
        %v1783 = vpop.f32.mrb[0].mxu0
        %1784 = vmatprep.mubr.bf16.mxu0 %v906
        %1785 = vmatmul.mubr.bf16.gmra.mrb[0].mxu0 %v905
        %v1786 = vpop.f32.mrb[0].mxu0
        %v1787 = vadd.f32 %v1498, %v1786
        %v1788 = vpop.f32.mrb[0].mxu0
        %v1789 = vpop.f32.mrb[0].mxu0
        %v1790 = vadd.f32 %v1501, %v1789
        %v1791 = vpop.f32.mrb[0].mxu0
        %1792 = vmatprep.mubr.bf16.mxu0 %v910
        %1793 = vmatmul.mubr.bf16.gmra.mrb[0].mxu0 %v909
        %v1794 = vpop.f32.mrb[0].mxu0
        %v1795 = vadd.f32 %v1506, %v1794
        %v1796 = vpop.f32.mrb[0].mxu0
        %v1797 = vpop.f32.mrb[0].mxu0
        %v1798 = vadd.f32 %v1509, %v1797
        %v1799 = vpop.f32.mrb[0].mxu0
        %1800 = vmatprep.mubr.bf16.mxu0 %v914
        %1801 = vmatmul.mubr.bf16.gmra.mrb[0].mxu0 %v913
        %v1802 = vpop.f32.mrb[0].mxu0
        %v1803 = vadd.f32 %v1514, %v1802
        %v1804 = vpop.f32.mrb[0].mxu0
        %v1805 = vpop.f32.mrb[0].mxu0
        %v1806 = vadd.f32 %v1517, %v1805
        %v1807 = vpop.f32.mrb[0].mxu0
        %1808 = vmatprep.mubr.bf16.mxu0 %v918
        %1809 = vmatmul.mubr.bf16.gmra.mrb[0].mxu0 %v917
        %v1810 = vpop.f32.mrb[0].mxu0
        %v1811 = vadd.f32 %v1522, %v1810
        %v1812 = vpop.f32.mrb[0].mxu0
        %v1813 = vpop.f32.mrb[0].mxu0
        %v1814 = vadd.f32 %v1525, %v1813
        %v1815 = vpop.f32.mrb[0].mxu0
        %1816 = vdwg.mxu0
        %v1817 = vmax.f32 %v1563, 0.0
        %v1818 = vmax.f32 %v1566, 0.0
        %v1819 = vmax.f32 %v1571, 0.0
        %v1820 = vmax.f32 %v1574, 0.0
        %v1821 = vmax.f32 %v1579, 0.0
        %v1822 = vmax.f32 %v1582, 0.0
        %v1823 = vmax.f32 %v1587, 0.0
        %v1824 = vmax.f32 %v1590, 0.0
        %v1825 = vmax.f32 %v1595, 0.0
        %v1826 = vmax.f32 %v1598, 0.0
        %v1827 = vmax.f32 %v1603, 0.0
        %v1828 = vmax.f32 %v1606, 0.0
        %v1829 = vmax.f32 %v1611, 0.0
        %v1830 = vmax.f32 %v1614, 0.0
        %v1831 = vmax.f32 %v1619, 0.0
        %v1832 = vmax.f32 %v1622, 0.0
        %v1833 = vmax.f32 %v1627, 0.0
        %v1834 = vmax.f32 %v1630, 0.0
        %v1835 = vmax.f32 %v1635, 0.0
        %v1836 = vmax.f32 %v1638, 0.0
        %v1837 = vmax.f32 %v1643, 0.0
        %v1838 = vmax.f32 %v1646, 0.0
        %v1839 = vmax.f32 %v1651, 0.0
        %v1840 = vmax.f32 %v1654, 0.0
        %v1841 = vmax.f32 %v1659, 0.0
        %v1842 = vmax.f32 %v1662, 0.0
        %v1843 = vmax.f32 %v1667, 0.0
        %v1844 = vmax.f32 %v1670, 0.0
        %v1845 = vmax.f32 %v1675, 0.0
        %v1846 = vmax.f32 %v1678, 0.0
        %v1847 = vmax.f32 %v1683, 0.0
        %v1848 = vmax.f32 %v1686, 0.0
        %v1849 = vmax.f32 %v1691, 0.0
        %v1850 = vmax.f32 %v1694, 0.0
        %v1851 = vmax.f32 %v1699, 0.0
        %v1852 = vmax.f32 %v1702, 0.0
        %v1853 = vmax.f32 %v1707, 0.0
        %v1854 = vmax.f32 %v1710, 0.0
        %v1855 = vmax.f32 %v1715, 0.0
        %v1856 = vmax.f32 %v1718, 0.0
        %v1857 = vmax.f32 %v1723, 0.0
        %v1858 = vmax.f32 %v1726, 0.0
        %v1859 = vmax.f32 %v1731, 0.0
        %v1860 = vmax.f32 %v1734, 0.0
        %v1861 = vmax.f32 %v1739, 0.0
        %v1862 = vmax.f32 %v1742, 0.0
        %v1863 = vmax.f32 %v1747, 0.0
        %v1864 = vmax.f32 %v1750, 0.0
        %v1865 = vmax.f32 %v1755, 0.0
        %v1866 = vmax.f32 %v1758, 0.0
        %v1867 = vmax.f32 %v1763, 0.0
        %v1868 = vmax.f32 %v1766, 0.0
        %v1869 = vmax.f32 %v1771, 0.0
        %v1870 = vmax.f32 %v1774, 0.0
        %v1871 = vmax.f32 %v1779, 0.0
        %v1872 = vmax.f32 %v1782, 0.0
        %v1873 = vmax.f32 %v1787, 0.0
        %v1874 = vmax.f32 %v1790, 0.0
        %v1875 = vmax.f32 %v1795, 0.0
        %v1876 = vmax.f32 %v1798, 0.0
        %v1877 = vmax.f32 %v1803, 0.0
        %v1878 = vmax.f32 %v1806, 0.0
        %v1879 = vmax.f32 %v1811, 0.0
        %v1880 = vmax.f32 %v1814, 0.0
        %1881 = vst [vmem:[%s204] sm:$0xff] %v1817
        %1882 = vst [vmem:[%s204 + $0x8] sm:$0xff] %v1818
        %1883 = vst [vmem:[%s204 + $0x10] sm:$0xff] %v1819
        %1884 = vst [vmem:[%s204 + $0x18] sm:$0xff] %v1820
        %1885 = vst [vmem:[%s204 + $0x20] sm:$0xff] %v1821
        %1886 = vst [vmem:[%s204 + $0x28] sm:$0xff] %v1822
        %1887 = vst [vmem:[%s204 + $0x30] sm:$0xff] %v1823
        %1888 = vst [vmem:[%s204 + $0x38] sm:$0xff] %v1824
        %1889 = vst [vmem:[%s204 + $0x40] sm:$0xff] %v1825
        %1890 = vst [vmem:[%s204 + $0x48] sm:$0xff] %v1826
        %1891 = vst [vmem:[%s204 + $0x50] sm:$0xff] %v1827
        %1892 = vst [vmem:[%s204 + $0x58] sm:$0xff] %v1828
        %1893 = vst [vmem:[%s204 + $0x60] sm:$0xff] %v1829
        %1894 = vst [vmem:[%s204 + $0x68] sm:$0xff] %v1830
        %1895 = vst [vmem:[%s204 + $0x70] sm:$0xff] %v1831
        %1896 = vst [vmem:[%s204 + $0x78] sm:$0xff] %v1832
        %1897 = vst [vmem:[%s204 + $0x80] sm:$0xff] %v1833
        %1898 = vst [vmem:[%s204 + $0x88] sm:$0xff] %v1834
        %1899 = vst [vmem:[%s204 + $0x90] sm:$0xff] %v1835
        %1900 = vst [vmem:[%s204 + $0x98] sm:$0xff] %v1836
        %1901 = vst [vmem:[%s204 + $0xa0] sm:$0xff] %v1837
        %1902 = vst [vmem:[%s204 + $0xa8] sm:$0xff] %v1838
        %1903 = vst [vmem:[%s204 + $0xb0] sm:$0xff] %v1839
        %1904 = vst [vmem:[%s204 + $0xb8] sm:$0xff] %v1840
        %1905 = vst [vmem:[%s204 + $0xc0] sm:$0xff] %v1841
        %1906 = vst [vmem:[%s204 + $0xc8] sm:$0xff] %v1842
        %1907 = vst [vmem:[%s204 + $0xd0] sm:$0xff] %v1843
        %1908 = vst [vmem:[%s204 + $0xd8] sm:$0xff] %v1844
        %1909 = vst [vmem:[%s204 + $0xe0] sm:$0xff] %v1845
        %1910 = vst [vmem:[%s204 + $0xe8] sm:$0xff] %v1846
        %1911 = vst [vmem:[%s204 + $0xf0] sm:$0xff] %v1847
        %1912 = vst [vmem:[%s204 + $0xf8] sm:$0xff] %v1848
        %1913 = vst [vmem:[%s204 + $0x100] sm:$0xff] %v1849
        %1914 = vst [vmem:[%s204 + $0x108] sm:$0xff] %v1850
        %1915 = vst [vmem:[%s204 + $0x110] sm:$0xff] %v1851
        %1916 = vst [vmem:[%s204 + $0x118] sm:$0xff] %v1852
        %1917 = vst [vmem:[%s204 + $0x120] sm:$0xff] %v1853
        %1918 = vst [vmem:[%s204 + $0x128] sm:$0xff] %v1854
        %1919 = vst [vmem:[%s204 + $0x130] sm:$0xff] %v1855
        %1920 = vst [vmem:[%s204 + $0x138] sm:$0xff] %v1856
        %1921 = vst [vmem:[%s204 + $0x140] sm:$0xff] %v1857
        %1922 = vst [vmem:[%s204 + $0x148] sm:$0xff] %v1858
        %1923 = vst [vmem:[%s204 + $0x150] sm:$0xff] %v1859
        %1924 = vst [vmem:[%s204 + $0x158] sm:$0xff] %v1860
        %1925 = vst [vmem:[%s204 + $0x160] sm:$0xff] %v1861
        %1926 = vst [vmem:[%s204 + $0x168] sm:$0xff] %v1862
        %1927 = vst [vmem:[%s204 + $0x170] sm:$0xff] %v1863
        %1928 = vst [vmem:[%s204 + $0x178] sm:$0xff] %v1864
        %1929 = vst [vmem:[%s204 + $0x180] sm:$0xff] %v1865
        %1930 = vst [vmem:[%s204 + $0x188] sm:$0xff] %v1866
        %1931 = vst [vmem:[%s204 + $0x190] sm:$0xff] %v1867
        %1932 = vst [vmem:[%s204 + $0x198] sm:$0xff] %v1868
        %1933 = vst [vmem:[%s204 + $0x1a0] sm:$0xff] %v1869
        %1934 = vst [vmem:[%s204 + $0x1a8] sm:$0xff] %v1870
        %1935 = vst [vmem:[%s204 + $0x1b0] sm:$0xff] %v1871
        %1936 = vst [vmem:[%s204 + $0x1b8] sm:$0xff] %v1872
        %1937 = vst [vmem:[%s204 + $0x1c0] sm:$0xff] %v1873
        %1938 = vst [vmem:[%s204 + $0x1c8] sm:$0xff] %v1874
        %1939 = vst [vmem:[%s204 + $0x1d0] sm:$0xff] %v1875
        %1940 = vst [vmem:[%s204 + $0x1d8] sm:$0xff] %v1876
        %1941 = vst [vmem:[%s204 + $0x1e0] sm:$0xff] %v1877
        %1942 = vst [vmem:[%s204 + $0x1e8] sm:$0xff] %v1878
        %1943 = vst [vmem:[%s204 + $0x1f0] sm:$0xff] %v1879
        %1944 = vst [vmem:[%s204 + $0x1f8] sm:$0xff] %v1880
        %s1945 = sand.u32 %s97, 1
        %s1946 = scalar_lea.sflag [#allocation4], %s1945
        %s1947 = sand.u32 %s97, 1
        %s1948 = smul.addr %s1947, 512
        %s1949 = scalar_lea.vmem [#allocation7], %s1948
        // Predicated region
        $region41: #{tpu_custom_call.1} parent=31 // pred_check
          %p1950 = pneg %p107
        $region42: #{tpu_custom_call.1} parent=31 // pred_check_branch
          %1952 = sbr.rel (%p1950) target = $region44
        $region43: #{tpu_custom_call.1} parent=31 // pred_region
          %s1953 = smul.u32 64, %s21
          %s1955 = ssub.s32 8192, 8192
          %1956 = vsyncadd %s1946, %s1955
          %s1957 = smul.addr %s1953, 128
          %s1958 = scalar_lea.hbm %s3, %s1957
          %s1959 = sshll.u32 %s1949, 4
          %s1960 = int_to_ptr.vmem [resolvable:$true] %s1959
          %1965 = dma.vmem_to_hbm [thread:$0]  %s1960, 8192, %s1958, %s1946, 128, 128, 8
        $region44: #{tpu_custom_call.1} parent=31 // pred_fallthru
          _
      $region32: #{tpu_custom_call.1} parent=5 // pred_fallthru
        _
      %p1966 = scmp.le.s32.totalorder 2, %s16
      // Predicated region
      $region45: #{tpu_custom_call.1} parent=5 // pred_check
        %p1967 = pneg %p1966
      $region46: #{tpu_custom_call.1} parent=5 // pred_check_branch
        %1969 = sbr.rel (%p1967) target = $region48
      $region47: #{tpu_custom_call.1} parent=5 // pred_region
        %s1970 = ssub.s32 %s16, 2
        // Predicated region
        $region49: #{tpu_custom_call.1} parent=47 // pred_check
          %p1971 = pneg %p113
        $region50: #{tpu_custom_call.1} parent=47 // pred_check_branch
          %1973 = sbr.rel (%p1971) target = $region52
        $region51: #{tpu_custom_call.1} parent=47 // pred_region
          %s1974 = sand.u32 %s98, 1
          %s1975 = scalar_lea.sflag [#allocation4], %s1974
          %s1976 = sand.u32 %s98, 1
          %s1977 = smul.addr %s1976, 512
          %s1978 = scalar_lea.vmem [#allocation7], %s1977
          %1979 = dma.done %s1975, 8192
        $region52: #{tpu_custom_call.1} parent=47 // pred_fallthru
          _
      $region48: #{tpu_custom_call.1} parent=5 // pred_fallthru
        _
    $region6: #{tpu_custom_call.1} parent=1 // loop_footer
      %s20 = sadd.s32 1, %s16
    $region7: #{tpu_custom_call.1} parent=1 // loop_footer_branch
      %15 = sbr.rel target = $region3
    $region8: #{tpu_custom_call.1} parent=1 // loop_exit
      _
    %1980 = vsyncpa [#allocation3], 1
    %s1981 = scalar_lea.sflag [#allocation3], 1
    %1982 = vsyncpa %s1981, 1
    %1983 = vsyncpa [#allocation6], 1
    %1984 = vsyncpa [#allocation4], 1
    %s1985 = scalar_lea.sflag [#allocation4], 1
    %1986 = vsyncpa %s1985, 1

</llo_original>
